<compile_context>
chip_gen: v7x
topology: tpu7x:2x2x1
jax: 0.10.0
libtpu: 0.0.40
codegen_flags: <defaults>
</compile_context>

<pallas_src>
import jax
import jax.numpy as jnp
from jax.experimental import pallas as pl
from jax.experimental.pallas import tpu as pltpu


def se_gate_mul_kernel(s_ref, w_ref, b_ref, x_ref, o_ref):
    # s_ref : [1, C_in]        squeezed input (x362 flattened), f32
    # w_ref : [C_out, C_in]    1x1 conv weight, bf16 (native layout, no transpose)
    # b_ref : [1, C_out]       conv bias, f32 (lane-dense row)
    # x_ref : [C_out, HW]      x359 in native NCHW-flattened layout
    # o_ref : [C_out, HW]      output, same layout / dtype as x359
    w = w_ref[...].astype(jnp.float32)                       # upcast in VMEM; f32 accumulate
    # Lane-dense matvec: contract on c_in of the original [C_out, C_in] weight.
    pre = jax.lax.dot_general(
        s_ref[...], w,
        dimension_numbers=(((1,), (1,)), ((), ())),
        preferred_element_type=jnp.float32)                  # [1, C_out], lane-dense
    z = pre + b_ref[...]
    gate_row = 1.0 / (1.0 + jnp.exp(-z))                     # sigmoid on ~11 full vregs

    # Tiny relayout of the gate row to a per-channel column (XLU work on ~5.5 KiB):
    # broadcast to a full 8-sublane tile, transpose, keep lane 0.
    gate8 = jnp.broadcast_to(gate_row, (8, gate_row.shape[1]))   # [8, C_out]
    gate_col = jnp.transpose(gate8, (1, 0))[:, 0:1]              # [C_out, 1]

    x = x_ref[...].astype(jnp.float32)                       # gate math in f32
    o_ref[...] = (gate_col * x).astype(o_ref.dtype)          # lane-broadcast multiply


def se_conv_sigmoid_mul(x362, x359, weight, bias):
    """x362: [1, C_in, 1, 1], x359: [1, C_out, H, W],
    weight: [C_out, C_in, 1, 1], bias: [C_out]."""
    n, c_in, _, _ = x362.shape
    _, c_out, h, w = x359.shape
    assert n == 1
    hw = h * w

    # Tiny operands: s/bias in f32, weight in bf16 (halves weight HBM traffic).
    s = x362.reshape(1, c_in).astype(jnp.float32)            # [1, C_in]
    wmat = weight.reshape(c_out, c_in).astype(jnp.bfloat16)  # [C_out, C_in], no transpose
    brow = bias.reshape(1, c_out).astype(jnp.float32)        # [1, C_out]

    # Big tensor stays in its native channel-major order: [C_out, HW] (free reshape).
    xflat = x359.reshape(c_out, hw)

    x_bytes = hw * c_out * xflat.dtype.itemsize
    out_flat = pl.pallas_call(
        se_gate_mul_kernel,
        out_shape=jax.ShapeDtypeStruct((c_out, hw), x359.dtype),
        grid=(1,),
        in_specs=[
            pl.BlockSpec((1, c_in), lambda i: (0, 0)),
            pl.BlockSpec((c_out, c_in), lambda i: (0, 0)),
            pl.BlockSpec((1, c_out), lambda i: (0, 0)),
            pl.BlockSpec((c_out, hw), lambda i: (0, 0)),
        ],
        out_specs=pl.BlockSpec((c_out, hw), lambda i: (0, 0)),
        compiler_params=pltpu.CompilerParams(
            dimension_semantics=("arbitrary",)),
        cost_estimate=pl.CostEstimate(
            flops=2 * c_out * c_in + 2 * hw * c_out,
            transcendentals=c_out,
            bytes_accessed=2 * x_bytes + c_out * c_in * 2 + (c_in + 2 * c_out) * 4,
        ),
    )(s, wmat, brow, xflat)

    # Back to the module's NCHW shape (free reshape, no transpose).
    return out_flat.reshape(1, c_out, h, w)


def reference(x362, x359, weight, bias):
    # Pure-JAX reference of the PyTorch forward (1x1 conv on 1x1 spatial + sigmoid + mul).
    s = x362.reshape(-1)                          # [C_in]
    wmat = weight.reshape(weight.shape[0], -1)    # [C_out, C_in]
    gate = jax.nn.sigmoid(wmat @ s + bias)        # [C_out]
    return gate[None, :, None, None] * x359


if __name__ == "__main__":
    key = jax.random.PRNGKey(0)
    k1, k2, k3, k4 = jax.random.split(key, 4)

    # Shapes implied by the module: Conv2d(58, 1392, 1x1), x359 is [1, 1392, 7, 7].
    C_IN, C_OUT, H, W = 58, 1392, 7, 7

    x362 = jax.random.normal(k1, (1, C_IN, 1, 1), dtype=jnp.float32)
    x359 = jax.random.normal(k2, (1, C_OUT, H, W), dtype=jnp.float32)

    bound = 1.0 / (C_IN ** 0.5)
    weight = jax.random.uniform(k3, (C_OUT, C_IN, 1, 1),
                                minval=-bound, maxval=bound, dtype=jnp.float32)
    bias = jax.random.uniform(k4, (C_OUT,),
                              minval=-bound, maxval=bound, dtype=jnp.float32)

    out = se_conv_sigmoid_mul(x362, x359, weight, bias)
    out = jax.block_until_ready(out)

    ref = reference(x362, x359, weight, bias)
    assert out.shape == (1, C_OUT, H, W)
    assert out.dtype == x359.dtype
    # Tolerance relaxed for the bf16-quantized conv weight (gate math itself is f32).
    assert jnp.allclose(out, ref, atol=5e-3, rtol=5e-3), "mismatch vs reference"

    print("KERNEL_OK")
</pallas_src>

<mosaic_0001>
module attributes {stable_mosaic.version = 11 : i64} {
  func.func @se_gate_mul_kernel(%arg0: i32, %arg1: memref<1x58xf32, #tpu.memory_space<vmem>>, %arg2: memref<1392x58xbf16, #tpu.memory_space<vmem>>, %arg3: memref<1x1392xf32, #tpu.memory_space<vmem>>, %arg4: memref<1392x49xf32, #tpu.memory_space<vmem>>, %arg5: memref<1392x49xf32, #tpu.memory_space<vmem>>) attributes {dimension_semantics = [#tpu.dimension_semantics<arbitrary>], iteration_bounds = array<i64: 1>, scalar_prefetch = 0 : i64, scratch_operands = 0 : i64, tpu.core_type = #tpu.core_type<tc>, window_params = [{pipeline_mode = #tpu.pipeline_mode<synchronous>, transform_indices = @transform_0, window_bounds = array<i64: 1, 58>}, {pipeline_mode = #tpu.pipeline_mode<synchronous>, transform_indices = @transform_1, window_bounds = array<i64: 1392, 58>}, {pipeline_mode = #tpu.pipeline_mode<synchronous>, transform_indices = @transform_2, window_bounds = array<i64: 1, 1392>}, {pipeline_mode = #tpu.pipeline_mode<synchronous>, transform_indices = @transform_3, window_bounds = array<i64: 1392, 49>}, {pipeline_mode = #tpu.pipeline_mode<synchronous>, transform_indices = @transform_4, window_bounds = array<i64: 1392, 49>}]} {
    %c0 = arith.constant 0 : index
    %c0_0 = arith.constant 0 : index
    %0 = vector.load %arg2[%c0, %c0_0] : memref<1392x58xbf16, #tpu.memory_space<vmem>>, vector<1392x58xbf16>
    %1 = arith.extf %0 : vector<1392x58xbf16> to vector<1392x58xf32>
    %c0_1 = arith.constant 0 : index
    %c0_2 = arith.constant 0 : index
    %2 = vector.load %arg1[%c0_1, %c0_2] : memref<1x58xf32, #tpu.memory_space<vmem>>, vector<1x58xf32>
    %cst = arith.constant dense<0.000000e+00> : vector<1x1392xf32>
    %3 = tpu.matmul %2, %1, %cst {dimension_numbers = #tpu.dot_dimension_numbers<[1], [1], [0], [0], [0, 0, 1, 0], [], []>} : vector<1x58xf32>, vector<1392x58xf32>, vector<1x1392xf32> -> vector<1x1392xf32>
    %c0_3 = arith.constant 0 : index
    %c0_4 = arith.constant 0 : index
    %4 = vector.load %arg3[%c0_3, %c0_4] : memref<1x1392xf32, #tpu.memory_space<vmem>>, vector<1x1392xf32>
    %5 = arith.addf %3, %4 : vector<1x1392xf32>
    %cst_5 = arith.constant 0.000000e+00 : f32
    %6 = vector.broadcast %cst_5 : f32 to vector<1x1392xf32>
    %7 = arith.subf %6, %5 : vector<1x1392xf32>
    %8 = math.exp %7 : vector<1x1392xf32>
    %cst_6 = arith.constant 1.000000e+00 : f32
    %9 = vector.broadcast %cst_6 : f32 to vector<1x1392xf32>
    %10 = arith.addf %9, %8 : vector<1x1392xf32>
    %cst_7 = arith.constant 1.000000e+00 : f32
    %11 = vector.broadcast %cst_7 : f32 to vector<1x1392xf32>
    %12 = arith.divf %11, %10 : vector<1x1392xf32>
    %13 = vector.shape_cast %12 : vector<1x1392xf32> to vector<1x1392xf32>
    %14 = vector.broadcast %13 : vector<1x1392xf32> to vector<8x1392xf32>
    %15 = tpu.transpose %14, [1, 0] : vector<8x1392xf32> -> vector<1392x8xf32>
    %16 = vector.extract_strided_slice %15 {offsets = [0, 0], sizes = [1392, 1], strides = [1, 1]} : vector<1392x8xf32> to vector<1392x1xf32>
    %c0_8 = arith.constant 0 : index
    %c0_9 = arith.constant 0 : index
    %17 = vector.load %arg4[%c0_8, %c0_9] : memref<1392x49xf32, #tpu.memory_space<vmem>>, vector<1392x49xf32>
    %18 = vector.broadcast %16 : vector<1392x1xf32> to vector<1392x49xf32>
    %19 = arith.mulf %18, %17 : vector<1392x49xf32>
    %c0_10 = arith.constant 0 : index
    %c0_11 = arith.constant 0 : index
    %20 = vector.load %arg5[%c0_10, %c0_11] : memref<1392x49xf32, #tpu.memory_space<vmem>>, vector<1392x49xf32>
    tpu.vector_store %arg5[%c0_10, %c0_11], %19 {strides = array<i32>} : memref<1392x49xf32, #tpu.memory_space<vmem>>, vector<1392x49xf32>,
    return
  }
  func.func @transform_0(%arg0: i32) -> (i32, i32) {
    %c0_i32 = arith.constant 0 : i32
    %c0_i32_0 = arith.constant 0 : i32
    %c0_i32_1 = arith.constant 0 : i32
    return %c0_i32, %c0_i32_0 : i32, i32
  }
  func.func @transform_1(%arg0: i32) -> (i32, i32) {
    %c0_i32 = arith.constant 0 : i32
    %c0_i32_0 = arith.constant 0 : i32
    %c0_i32_1 = arith.constant 0 : i32
    return %c0_i32, %c0_i32_0 : i32, i32
  }
  func.func @transform_2(%arg0: i32) -> (i32, i32) {
    %c0_i32 = arith.constant 0 : i32
    %c0_i32_0 = arith.constant 0 : i32
    %c0_i32_1 = arith.constant 0 : i32
    return %c0_i32, %c0_i32_0 : i32, i32
  }
  func.func @transform_3(%arg0: i32) -> (i32, i32) {
    %c0_i32 = arith.constant 0 : i32
    %c0_i32_0 = arith.constant 0 : i32
    %c0_i32_1 = arith.constant 0 : i32
    return %c0_i32, %c0_i32_0 : i32, i32
  }
  func.func @transform_4(%arg0: i32) -> (i32, i32) {
    %c0_i32 = arith.constant 0 : i32
    %c0_i32_0 = arith.constant 0 : i32
    %c0_i32_1 = arith.constant 0 : i32
    return %c0_i32, %c0_i32_0 : i32, i32
  }
}

</mosaic_0001>

<llo_original>
// kernel: tpu_custom_call.1
$region0: #{tpu_custom_call.1}
  #allocation0 [shape = 'u32[]', space=smem, size = 0x4, offset = 0x4, fixed_abs, tag = 'smem constant byte address 0x4 - core index']
  #allocation1 [shape = 'u32[144,128]{1,0:T(1,128)}', space=vmem, size = 0x12000, scoped, tag = 'internal scratch']
  %s0 = inlined_call_operand.vmem [shape: f32[1,58], index: 0, kind: input, shape index: {}]
  %s1 = inlined_call_operand.vmem [shape: bf16[1392,58], index: 1, kind: input, shape index: {}]
  %s2 = inlined_call_operand.vmem [shape: f32[1,1392], index: 2, kind: input, shape index: {}]
  %s3 = inlined_call_operand.vmem [shape: f32[1392,49], index: 3, kind: input, shape index: {}]
  %s4 = inlined_call_operand.vmem [shape: f32[1392,49], index: 4, kind: output, shape index: {}]
  %s5 = sld [smem:[#allocation0]]
  $region26: #{tpu_custom_call.1} parent=0
    _
  %s7 = ssub.s32 1, %s5
  %s8 = scalar_select 0, %s7, %s5
  // Predicated region
  $region2: #{tpu_custom_call.1} parent=0 // pred_check
    _
  $region3: #{tpu_custom_call.1} parent=0 // pred_check_branch
    %10 = sbr.rel (0) target = $region5
  $region4: #{tpu_custom_call.1} parent=0 // pred_region
    _
  $region5: #{tpu_custom_call.1} parent=0 // pred_fallthru
    _
  // Predicated region
  $region6: #{tpu_custom_call.1} parent=0 // pred_check
    _
  $region7: #{tpu_custom_call.1} parent=0 // pred_check_branch
    %12 = sbr.rel (0) target = $region9
  $region8: #{tpu_custom_call.1} parent=0 // pred_region
    _
  $region9: #{tpu_custom_call.1} parent=0 // pred_fallthru
    _
  // Predicated region
  $region10: #{tpu_custom_call.1} parent=0 // pred_check
    _
  $region11: #{tpu_custom_call.1} parent=0 // pred_check_branch
    %14 = sbr.rel (0) target = $region13
  $region12: #{tpu_custom_call.1} parent=0 // pred_region
    _
  $region13: #{tpu_custom_call.1} parent=0 // pred_fallthru
    _
  // Predicated region
  $region14: #{tpu_custom_call.1} parent=0 // pred_check
    _
  $region15: #{tpu_custom_call.1} parent=0 // pred_check_branch
    %16 = sbr.rel (0) target = $region17
  $region16: #{tpu_custom_call.1} parent=0 // pred_region
    _
  $region17: #{tpu_custom_call.1} parent=0 // pred_fallthru
    _
  %v17 = vld [vmem:[%s1] sm:$0xf]
  %v18 = vld [vmem:[%s1 + $0x4] sm:$0xf]
  %v19 = vld [vmem:[%s1 + $0x8] sm:$0xf]
  %v20 = vld [vmem:[%s1 + $0xc] sm:$0xf]
  %v21 = vld [vmem:[%s1 + $0x10] sm:$0xf]
  %v22 = vld [vmem:[%s1 + $0x14] sm:$0xf]
  %v23 = vld [vmem:[%s1 + $0x18] sm:$0xf]
  %v24 = vld [vmem:[%s1 + $0x1c] sm:$0xf]
  %v25 = vld [vmem:[%s1 + $0x20] sm:$0xf]
  %v26 = vld [vmem:[%s1 + $0x24] sm:$0xf]
  %v27 = vld [vmem:[%s1 + $0x28] sm:$0xf]
  %v28 = vld [vmem:[%s1 + $0x2c] sm:$0xf]
  %v29 = vld [vmem:[%s1 + $0x30] sm:$0xf]
  %v30 = vld [vmem:[%s1 + $0x34] sm:$0xf]
  %v31 = vld [vmem:[%s1 + $0x38] sm:$0xf]
  %v32 = vld [vmem:[%s1 + $0x3c] sm:$0xf]
  %v33 = vld [vmem:[%s1 + $0x40] sm:$0xf]
  %v34 = vld [vmem:[%s1 + $0x44] sm:$0xf]
  %v35 = vld [vmem:[%s1 + $0x48] sm:$0xf]
  %v36 = vld [vmem:[%s1 + $0x4c] sm:$0xf]
  %v37 = vld [vmem:[%s1 + $0x50] sm:$0xf]
  %v38 = vld [vmem:[%s1 + $0x54] sm:$0xf]
  %v39 = vld [vmem:[%s1 + $0x58] sm:$0xf]
  %v40 = vld [vmem:[%s1 + $0x5c] sm:$0xf]
  %v41 = vld [vmem:[%s1 + $0x60] sm:$0xf]
  %v42 = vld [vmem:[%s1 + $0x64] sm:$0xf]
  %v43 = vld [vmem:[%s1 + $0x68] sm:$0xf]
  %v44 = vld [vmem:[%s1 + $0x6c] sm:$0xf]
  %v45 = vld [vmem:[%s1 + $0x70] sm:$0xf]
  %v46 = vld [vmem:[%s1 + $0x74] sm:$0xf]
  %v47 = vld [vmem:[%s1 + $0x78] sm:$0xf]
  %v48 = vld [vmem:[%s1 + $0x7c] sm:$0xf]
  %v49 = vld [vmem:[%s1 + $0x80] sm:$0xf]
  %v50 = vld [vmem:[%s1 + $0x84] sm:$0xf]
  %v51 = vld [vmem:[%s1 + $0x88] sm:$0xf]
  %v52 = vld [vmem:[%s1 + $0x8c] sm:$0xf]
  %v53 = vld [vmem:[%s1 + $0x90] sm:$0xf]
  %v54 = vld [vmem:[%s1 + $0x94] sm:$0xf]
  %v55 = vld [vmem:[%s1 + $0x98] sm:$0xf]
  %v56 = vld [vmem:[%s1 + $0x9c] sm:$0xf]
  %v57 = vld [vmem:[%s1 + $0xa0] sm:$0xf]
  %v58 = vld [vmem:[%s1 + $0xa4] sm:$0xf]
  %v59 = vld [vmem:[%s1 + $0xa8] sm:$0xf]
  %v60 = vld [vmem:[%s1 + $0xac] sm:$0xf]
  %v61 = vld [vmem:[%s1 + $0xb0] sm:$0xf]
  %v62 = vld [vmem:[%s1 + $0xb4] sm:$0xf]
  %v63 = vld [vmem:[%s1 + $0xb8] sm:$0xf]
  %v64 = vld [vmem:[%s1 + $0xbc] sm:$0xf]
  %v65 = vld [vmem:[%s1 + $0xc0] sm:$0xf]
  %v66 = vld [vmem:[%s1 + $0xc4] sm:$0xf]
  %v67 = vld [vmem:[%s1 + $0xc8] sm:$0xf]
  %v68 = vld [vmem:[%s1 + $0xcc] sm:$0xf]
  %v69 = vld [vmem:[%s1 + $0xd0] sm:$0xf]
  %v70 = vld [vmem:[%s1 + $0xd4] sm:$0xf]
  %v71 = vld [vmem:[%s1 + $0xd8] sm:$0xf]
  %v72 = vld [vmem:[%s1 + $0xdc] sm:$0xf]
  %v73 = vld [vmem:[%s1 + $0xe0] sm:$0xf]
  %v74 = vld [vmem:[%s1 + $0xe4] sm:$0xf]
  %v75 = vld [vmem:[%s1 + $0xe8] sm:$0xf]
  %v76 = vld [vmem:[%s1 + $0xec] sm:$0xf]
  %v77 = vld [vmem:[%s1 + $0xf0] sm:$0xf]
  %v78 = vld [vmem:[%s1 + $0xf4] sm:$0xf]
  %v79 = vld [vmem:[%s1 + $0xf8] sm:$0xf]
  %v80 = vld [vmem:[%s1 + $0xfc] sm:$0xf]
  %v81 = vld [vmem:[%s1 + $0x100] sm:$0xf]
  %v82 = vld [vmem:[%s1 + $0x104] sm:$0xf]
  %v83 = vld [vmem:[%s1 + $0x108] sm:$0xf]
  %v84 = vld [vmem:[%s1 + $0x10c] sm:$0xf]
  %v85 = vld [vmem:[%s1 + $0x110] sm:$0xf]
  %v86 = vld [vmem:[%s1 + $0x114] sm:$0xf]
  %v87 = vld [vmem:[%s1 + $0x118] sm:$0xf]
  %v88 = vld [vmem:[%s1 + $0x11c] sm:$0xf]
  %v89 = vld [vmem:[%s1 + $0x120] sm:$0xf]
  %v90 = vld [vmem:[%s1 + $0x124] sm:$0xf]
  %v91 = vld [vmem:[%s1 + $0x128] sm:$0xf]
  %v92 = vld [vmem:[%s1 + $0x12c] sm:$0xf]
  %v93 = vld [vmem:[%s1 + $0x130] sm:$0xf]
  %v94 = vld [vmem:[%s1 + $0x134] sm:$0xf]
  %v95 = vld [vmem:[%s1 + $0x138] sm:$0xf]
  %v96 = vld [vmem:[%s1 + $0x13c] sm:$0xf]
  %v97 = vld [vmem:[%s1 + $0x140] sm:$0xf]
  %v98 = vld [vmem:[%s1 + $0x144] sm:$0xf]
  %v99 = vld [vmem:[%s1 + $0x148] sm:$0xf]
  %v100 = vld [vmem:[%s1 + $0x14c] sm:$0xf]
  %v101 = vld [vmem:[%s1 + $0x150] sm:$0xf]
  %v102 = vld [vmem:[%s1 + $0x154] sm:$0xf]
  %v103 = vld [vmem:[%s1 + $0x158] sm:$0xf]
  %v104 = vld [vmem:[%s1 + $0x15c] sm:$0xf]
  %v105 = vld [vmem:[%s1 + $0x160] sm:$0xf]
  %v106 = vld [vmem:[%s1 + $0x164] sm:$0xf]
  %v107 = vld [vmem:[%s1 + $0x168] sm:$0xf]
  %v108 = vld [vmem:[%s1 + $0x16c] sm:$0xf]
  %v109 = vld [vmem:[%s1 + $0x170] sm:$0xf]
  %v110 = vld [vmem:[%s1 + $0x174] sm:$0xf]
  %v111 = vld [vmem:[%s1 + $0x178] sm:$0xf]
  %v112 = vld [vmem:[%s1 + $0x17c] sm:$0xf]
  %v113 = vld [vmem:[%s1 + $0x180] sm:$0xf]
  %v114 = vld [vmem:[%s1 + $0x184] sm:$0xf]
  %v115 = vld [vmem:[%s1 + $0x188] sm:$0xf]
  %v116 = vld [vmem:[%s1 + $0x18c] sm:$0xf]
  %v117 = vld [vmem:[%s1 + $0x190] sm:$0xf]
  %v118 = vld [vmem:[%s1 + $0x194] sm:$0xf]
  %v119 = vld [vmem:[%s1 + $0x198] sm:$0xf]
  %v120 = vld [vmem:[%s1 + $0x19c] sm:$0xf]
  %v121 = vld [vmem:[%s1 + $0x1a0] sm:$0xf]
  %v122 = vld [vmem:[%s1 + $0x1a4] sm:$0xf]
  %v123 = vld [vmem:[%s1 + $0x1a8] sm:$0xf]
  %v124 = vld [vmem:[%s1 + $0x1ac] sm:$0xf]
  %v125 = vld [vmem:[%s1 + $0x1b0] sm:$0xf]
  %v126 = vld [vmem:[%s1 + $0x1b4] sm:$0xf]
  %v127 = vld [vmem:[%s1 + $0x1b8] sm:$0xf]
  %v128 = vld [vmem:[%s1 + $0x1bc] sm:$0xf]
  %v129 = vld [vmem:[%s1 + $0x1c0] sm:$0xf]
  %v130 = vld [vmem:[%s1 + $0x1c4] sm:$0xf]
  %v131 = vld [vmem:[%s1 + $0x1c8] sm:$0xf]
  %v132 = vld [vmem:[%s1 + $0x1cc] sm:$0xf]
  %v133 = vld [vmem:[%s1 + $0x1d0] sm:$0xf]
  %v134 = vld [vmem:[%s1 + $0x1d4] sm:$0xf]
  %v135 = vld [vmem:[%s1 + $0x1d8] sm:$0xf]
  %v136 = vld [vmem:[%s1 + $0x1dc] sm:$0xf]
  %v137 = vld [vmem:[%s1 + $0x1e0] sm:$0xf]
  %v138 = vld [vmem:[%s1 + $0x1e4] sm:$0xf]
  %v139 = vld [vmem:[%s1 + $0x1e8] sm:$0xf]
  %v140 = vld [vmem:[%s1 + $0x1ec] sm:$0xf]
  %v141 = vld [vmem:[%s1 + $0x1f0] sm:$0xf]
  %v142 = vld [vmem:[%s1 + $0x1f4] sm:$0xf]
  %v143 = vld [vmem:[%s1 + $0x1f8] sm:$0xf]
  %v144 = vld [vmem:[%s1 + $0x1fc] sm:$0xf]
  %v145 = vld [vmem:[%s1 + $0x200] sm:$0xf]
  %v146 = vld [vmem:[%s1 + $0x204] sm:$0xf]
  %v147 = vld [vmem:[%s1 + $0x208] sm:$0xf]
  %v148 = vld [vmem:[%s1 + $0x20c] sm:$0xf]
  %v149 = vld [vmem:[%s1 + $0x210] sm:$0xf]
  %v150 = vld [vmem:[%s1 + $0x214] sm:$0xf]
  %v151 = vld [vmem:[%s1 + $0x218] sm:$0xf]
  %v152 = vld [vmem:[%s1 + $0x21c] sm:$0xf]
  %v153 = vld [vmem:[%s1 + $0x220] sm:$0xf]
  %v154 = vld [vmem:[%s1 + $0x224] sm:$0xf]
  %v155 = vld [vmem:[%s1 + $0x228] sm:$0xf]
  %v156 = vld [vmem:[%s1 + $0x22c] sm:$0xf]
  %v157 = vld [vmem:[%s1 + $0x230] sm:$0xf]
  %v158 = vld [vmem:[%s1 + $0x234] sm:$0xf]
  %v159 = vld [vmem:[%s1 + $0x238] sm:$0xf]
  %v160 = vld [vmem:[%s1 + $0x23c] sm:$0xf]
  %v161 = vld [vmem:[%s1 + $0x240] sm:$0xf]
  %v162 = vld [vmem:[%s1 + $0x244] sm:$0xf]
  %v163 = vld [vmem:[%s1 + $0x248] sm:$0xf]
  %v164 = vld [vmem:[%s1 + $0x24c] sm:$0xf]
  %v165 = vld [vmem:[%s1 + $0x250] sm:$0xf]
  %v166 = vld [vmem:[%s1 + $0x254] sm:$0xf]
  %v167 = vld [vmem:[%s1 + $0x258] sm:$0xf]
  %v168 = vld [vmem:[%s1 + $0x25c] sm:$0xf]
  %v169 = vld [vmem:[%s1 + $0x260] sm:$0xf]
  %v170 = vld [vmem:[%s1 + $0x264] sm:$0xf]
  %v171 = vld [vmem:[%s1 + $0x268] sm:$0xf]
  %v172 = vld [vmem:[%s1 + $0x26c] sm:$0xf]
  %v173 = vld [vmem:[%s1 + $0x270] sm:$0xf]
  %v174 = vld [vmem:[%s1 + $0x274] sm:$0xf]
  %v175 = vld [vmem:[%s1 + $0x278] sm:$0xf]
  %v176 = vld [vmem:[%s1 + $0x27c] sm:$0xf]
  %v177 = vld [vmem:[%s1 + $0x280] sm:$0xf]
  %v178 = vld [vmem:[%s1 + $0x284] sm:$0xf]
  %v179 = vld [vmem:[%s1 + $0x288] sm:$0xf]
  %v180 = vld [vmem:[%s1 + $0x28c] sm:$0xf]
  %v181 = vld [vmem:[%s1 + $0x290] sm:$0xf]
  %v182 = vld [vmem:[%s1 + $0x294] sm:$0xf]
  %v183 = vld [vmem:[%s1 + $0x298] sm:$0xf]
  %v184 = vld [vmem:[%s1 + $0x29c] sm:$0xf]
  %v185 = vld [vmem:[%s1 + $0x2a0] sm:$0xf]
  %v186 = vld [vmem:[%s1 + $0x2a4] sm:$0xf]
  %v187 = vld [vmem:[%s1 + $0x2a8] sm:$0xf]
  %v188 = vld [vmem:[%s1 + $0x2ac] sm:$0xf]
  %v189 = vld [vmem:[%s1 + $0x2b0] sm:$0xf]
  %v190 = vld [vmem:[%s1 + $0x2b4] sm:$0xf]
  %v191 = vunpack.c.l.bf16 %v17
  %v192 = vunpack.c.l.bf16 %v18
  %v193 = vunpack.c.l.bf16 %v19
  %v194 = vunpack.c.l.bf16 %v20
  %v195 = vunpack.c.l.bf16 %v21
  %v196 = vunpack.c.l.bf16 %v22
  %v197 = vunpack.c.l.bf16 %v23
  %v198 = vunpack.c.l.bf16 %v24
  %v199 = vunpack.c.l.bf16 %v25
  %v200 = vunpack.c.l.bf16 %v26
  %v201 = vunpack.c.l.bf16 %v27
  %v202 = vunpack.c.l.bf16 %v28
  %v203 = vunpack.c.l.bf16 %v29
  %v204 = vunpack.c.l.bf16 %v30
  %v205 = vunpack.c.l.bf16 %v31
  %v206 = vunpack.c.l.bf16 %v32
  %v207 = vunpack.c.l.bf16 %v33
  %v208 = vunpack.c.l.bf16 %v34
  %v209 = vunpack.c.l.bf16 %v35
  %v210 = vunpack.c.l.bf16 %v36
  %v211 = vunpack.c.l.bf16 %v37
  %v212 = vunpack.c.l.bf16 %v38
  %v213 = vunpack.c.l.bf16 %v39
  %v214 = vunpack.c.l.bf16 %v40
  %v215 = vunpack.c.l.bf16 %v41
  %v216 = vunpack.c.l.bf16 %v42
  %v217 = vunpack.c.l.bf16 %v43
  %v218 = vunpack.c.l.bf16 %v44
  %v219 = vunpack.c.l.bf16 %v45
  %v220 = vunpack.c.l.bf16 %v46
  %v221 = vunpack.c.l.bf16 %v47
  %v222 = vunpack.c.l.bf16 %v48
  %v223 = vunpack.c.l.bf16 %v49
  %v224 = vunpack.c.l.bf16 %v50
  %v225 = vunpack.c.l.bf16 %v51
  %v226 = vunpack.c.l.bf16 %v52
  %v227 = vunpack.c.l.bf16 %v53
  %v228 = vunpack.c.l.bf16 %v54
  %v229 = vunpack.c.l.bf16 %v55
  %v230 = vunpack.c.l.bf16 %v56
  %v231 = vunpack.c.l.bf16 %v57
  %v232 = vunpack.c.l.bf16 %v58
  %v233 = vunpack.c.l.bf16 %v59
  %v234 = vunpack.c.l.bf16 %v60
  %v235 = vunpack.c.l.bf16 %v61
  %v236 = vunpack.c.l.bf16 %v62
  %v237 = vunpack.c.l.bf16 %v63
  %v238 = vunpack.c.l.bf16 %v64
  %v239 = vunpack.c.l.bf16 %v65
  %v240 = vunpack.c.l.bf16 %v66
  %v241 = vunpack.c.l.bf16 %v67
  %v242 = vunpack.c.l.bf16 %v68
  %v243 = vunpack.c.l.bf16 %v69
  %v244 = vunpack.c.l.bf16 %v70
  %v245 = vunpack.c.l.bf16 %v71
  %v246 = vunpack.c.l.bf16 %v72
  %v247 = vunpack.c.l.bf16 %v73
  %v248 = vunpack.c.l.bf16 %v74
  %v249 = vunpack.c.l.bf16 %v75
  %v250 = vunpack.c.l.bf16 %v76
  %v251 = vunpack.c.l.bf16 %v77
  %v252 = vunpack.c.l.bf16 %v78
  %v253 = vunpack.c.l.bf16 %v79
  %v254 = vunpack.c.l.bf16 %v80
  %v255 = vunpack.c.l.bf16 %v81
  %v256 = vunpack.c.l.bf16 %v82
  %v257 = vunpack.c.l.bf16 %v83
  %v258 = vunpack.c.l.bf16 %v84
  %v259 = vunpack.c.l.bf16 %v85
  %v260 = vunpack.c.l.bf16 %v86
  %v261 = vunpack.c.l.bf16 %v87
  %v262 = vunpack.c.l.bf16 %v88
  %v263 = vunpack.c.l.bf16 %v89
  %v264 = vunpack.c.l.bf16 %v90
  %v265 = vunpack.c.l.bf16 %v91
  %v266 = vunpack.c.l.bf16 %v92
  %v267 = vunpack.c.l.bf16 %v93
  %v268 = vunpack.c.l.bf16 %v94
  %v269 = vunpack.c.l.bf16 %v95
  %v270 = vunpack.c.l.bf16 %v96
  %v271 = vunpack.c.l.bf16 %v97
  %v272 = vunpack.c.l.bf16 %v98
  %v273 = vunpack.c.l.bf16 %v99
  %v274 = vunpack.c.l.bf16 %v100
  %v275 = vunpack.c.l.bf16 %v101
  %v276 = vunpack.c.l.bf16 %v102
  %v277 = vunpack.c.l.bf16 %v103
  %v278 = vunpack.c.l.bf16 %v104
  %v279 = vunpack.c.l.bf16 %v105
  %v280 = vunpack.c.l.bf16 %v106
  %v281 = vunpack.c.l.bf16 %v107
  %v282 = vunpack.c.l.bf16 %v108
  %v283 = vunpack.c.l.bf16 %v109
  %v284 = vunpack.c.l.bf16 %v110
  %v285 = vunpack.c.l.bf16 %v111
  %v286 = vunpack.c.l.bf16 %v112
  %v287 = vunpack.c.l.bf16 %v113
  %v288 = vunpack.c.l.bf16 %v114
  %v289 = vunpack.c.l.bf16 %v115
  %v290 = vunpack.c.l.bf16 %v116
  %v291 = vunpack.c.l.bf16 %v117
  %v292 = vunpack.c.l.bf16 %v118
  %v293 = vunpack.c.l.bf16 %v119
  %v294 = vunpack.c.l.bf16 %v120
  %v295 = vunpack.c.l.bf16 %v121
  %v296 = vunpack.c.l.bf16 %v122
  %v297 = vunpack.c.l.bf16 %v123
  %v298 = vunpack.c.l.bf16 %v124
  %v299 = vunpack.c.l.bf16 %v125
  %v300 = vunpack.c.l.bf16 %v126
  %v301 = vunpack.c.l.bf16 %v127
  %v302 = vunpack.c.l.bf16 %v128
  %v303 = vunpack.c.l.bf16 %v129
  %v304 = vunpack.c.l.bf16 %v130
  %v305 = vunpack.c.l.bf16 %v131
  %v306 = vunpack.c.l.bf16 %v132
  %v307 = vunpack.c.l.bf16 %v133
  %v308 = vunpack.c.l.bf16 %v134
  %v309 = vunpack.c.l.bf16 %v135
  %v310 = vunpack.c.l.bf16 %v136
  %v311 = vunpack.c.l.bf16 %v137
  %v312 = vunpack.c.l.bf16 %v138
  %v313 = vunpack.c.l.bf16 %v139
  %v314 = vunpack.c.l.bf16 %v140
  %v315 = vunpack.c.l.bf16 %v141
  %v316 = vunpack.c.l.bf16 %v142
  %v317 = vunpack.c.l.bf16 %v143
  %v318 = vunpack.c.l.bf16 %v144
  %v319 = vunpack.c.l.bf16 %v145
  %v320 = vunpack.c.l.bf16 %v146
  %v321 = vunpack.c.l.bf16 %v147
  %v322 = vunpack.c.l.bf16 %v148
  %v323 = vunpack.c.l.bf16 %v149
  %v324 = vunpack.c.l.bf16 %v150
  %v325 = vunpack.c.l.bf16 %v151
  %v326 = vunpack.c.l.bf16 %v152
  %v327 = vunpack.c.l.bf16 %v153
  %v328 = vunpack.c.l.bf16 %v154
  %v329 = vunpack.c.l.bf16 %v155
  %v330 = vunpack.c.l.bf16 %v156
  %v331 = vunpack.c.l.bf16 %v157
  %v332 = vunpack.c.l.bf16 %v158
  %v333 = vunpack.c.l.bf16 %v159
  %v334 = vunpack.c.l.bf16 %v160
  %v335 = vunpack.c.l.bf16 %v161
  %v336 = vunpack.c.l.bf16 %v162
  %v337 = vunpack.c.l.bf16 %v163
  %v338 = vunpack.c.l.bf16 %v164
  %v339 = vunpack.c.l.bf16 %v165
  %v340 = vunpack.c.l.bf16 %v166
  %v341 = vunpack.c.l.bf16 %v167
  %v342 = vunpack.c.l.bf16 %v168
  %v343 = vunpack.c.l.bf16 %v169
  %v344 = vunpack.c.l.bf16 %v170
  %v345 = vunpack.c.l.bf16 %v171
  %v346 = vunpack.c.l.bf16 %v172
  %v347 = vunpack.c.l.bf16 %v173
  %v348 = vunpack.c.l.bf16 %v174
  %v349 = vunpack.c.l.bf16 %v175
  %v350 = vunpack.c.l.bf16 %v176
  %v351 = vunpack.c.l.bf16 %v177
  %v352 = vunpack.c.l.bf16 %v178
  %v353 = vunpack.c.l.bf16 %v179
  %v354 = vunpack.c.l.bf16 %v180
  %v355 = vunpack.c.l.bf16 %v181
  %v356 = vunpack.c.l.bf16 %v182
  %v357 = vunpack.c.l.bf16 %v183
  %v358 = vunpack.c.l.bf16 %v184
  %v359 = vunpack.c.l.bf16 %v185
  %v360 = vunpack.c.l.bf16 %v186
  %v361 = vunpack.c.l.bf16 %v187
  %v362 = vunpack.c.l.bf16 %v188
  %v363 = vunpack.c.l.bf16 %v189
  %v364 = vunpack.c.l.bf16 %v190
  %v365 = vld [vmem:[%s0] sm:$0x1]
  %v366 = vld [vmem:[%s2] sm:$0xff]
  %v367 = vld [vmem:[%s2 + $0x8] sm:$0x7]
  %v370 = vlaneseq
  %v371 = vshrl.u32 %v370, 7
  %v372 = vsub.s32 0, %v371
  %v373 = vrot.slane %v366, %v372
  %v374 = vlaneseq
  %v375 = vshrl.u32 %v374, 7
  %v376 = vsub.s32 1, %v375
  %v377 = vrot.slane %v366, %v376
  %v378 = vlaneseq
  %v379 = vshrl.u32 %v378, 7
  %v380 = vsub.s32 2, %v379
  %v381 = vrot.slane %v366, %v380
  %v382 = vlaneseq
  %v383 = vshrl.u32 %v382, 7
  %v384 = vsub.s32 3, %v383
  %v385 = vrot.slane %v366, %v384
  %v386 = vlaneseq
  %v387 = vshrl.u32 %v386, 7
  %v388 = vsub.s32 4, %v387
  %v389 = vrot.slane %v366, %v388
  %v390 = vlaneseq
  %v391 = vshrl.u32 %v390, 7
  %v392 = vsub.s32 5, %v391
  %v393 = vrot.slane %v366, %v392
  %v394 = vlaneseq
  %v395 = vshrl.u32 %v394, 7
  %v396 = vsub.s32 6, %v395
  %v397 = vrot.slane %v366, %v396
  %v398 = vlaneseq
  %v399 = vshrl.u32 %v398, 7
  %v400 = vsub.s32 7, %v399
  %v401 = vrot.slane %v366, %v400
  %v402 = vlaneseq
  %v403 = vshrl.u32 %v402, 7
  %v404 = vsub.s32 0, %v403
  %v405 = vrot.slane %v367, %v404
  %v406 = vlaneseq
  %v407 = vshrl.u32 %v406, 7
  %v408 = vsub.s32 1, %v407
  %v409 = vrot.slane %v367, %v408
  %v410 = vlaneseq
  %v411 = vshrl.u32 %v410, 7
  %v412 = vsub.s32 2, %v411
  %v413 = vrot.slane %v367, %v412
  %vm425 = vcmask 474112
  %v427 = vsel %vm425, %v365, 0
  %v430 = vsel %vm425, %v191, 0
  %v433 = vsel %vm425, %v192, 0
  %v436 = vsel %vm425, %v193, 0
  %v439 = vsel %vm425, %v194, 0
  %v442 = vsel %vm425, %v195, 0
  %v445 = vsel %vm425, %v196, 0
  %v448 = vsel %vm425, %v197, 0
  %v451 = vsel %vm425, %v198, 0
  %v454 = vsel %vm425, %v199, 0
  %v457 = vsel %vm425, %v200, 0
  %v460 = vsel %vm425, %v201, 0
  %v463 = vsel %vm425, %v202, 0
  %v466 = vsel %vm425, %v203, 0
  %v469 = vsel %vm425, %v204, 0
  %v472 = vsel %vm425, %v205, 0
  %v475 = vsel %vm425, %v206, 0
  %v478 = vsel %vm425, %v207, 0
  %v481 = vsel %vm425, %v208, 0
  %v484 = vsel %vm425, %v209, 0
  %v487 = vsel %vm425, %v210, 0
  %v490 = vsel %vm425, %v211, 0
  %v493 = vsel %vm425, %v212, 0
  %v496 = vsel %vm425, %v213, 0
  %v499 = vsel %vm425, %v214, 0
  %v502 = vsel %vm425, %v215, 0
  %v505 = vsel %vm425, %v216, 0
  %v508 = vsel %vm425, %v217, 0
  %v511 = vsel %vm425, %v218, 0
  %v514 = vsel %vm425, %v219, 0
  %v517 = vsel %vm425, %v220, 0
  %v520 = vsel %vm425, %v221, 0
  %v523 = vsel %vm425, %v222, 0
  %v526 = vsel %vm425, %v223, 0
  %v529 = vsel %vm425, %v224, 0
  %v532 = vsel %vm425, %v225, 0
  %v535 = vsel %vm425, %v226, 0
  %v538 = vsel %vm425, %v227, 0
  %v541 = vsel %vm425, %v228, 0
  %v544 = vsel %vm425, %v229, 0
  %v547 = vsel %vm425, %v230, 0
  %v550 = vsel %vm425, %v231, 0
  %v553 = vsel %vm425, %v232, 0
  %v556 = vsel %vm425, %v233, 0
  %v559 = vsel %vm425, %v234, 0
  %v562 = vsel %vm425, %v235, 0
  %v565 = vsel %vm425, %v236, 0
  %v568 = vsel %vm425, %v237, 0
  %v571 = vsel %vm425, %v238, 0
  %v574 = vsel %vm425, %v239, 0
  %v577 = vsel %vm425, %v240, 0
  %v580 = vsel %vm425, %v241, 0
  %v583 = vsel %vm425, %v242, 0
  %v586 = vsel %vm425, %v243, 0
  %v589 = vsel %vm425, %v244, 0
  %v592 = vsel %vm425, %v245, 0
  %v595 = vsel %vm425, %v246, 0
  %v598 = vsel %vm425, %v247, 0
  %v601 = vsel %vm425, %v248, 0
  %v604 = vsel %vm425, %v249, 0
  %v607 = vsel %vm425, %v250, 0
  %v610 = vsel %vm425, %v251, 0
  %v613 = vsel %vm425, %v252, 0
  %v616 = vsel %vm425, %v253, 0
  %v619 = vsel %vm425, %v254, 0
  %v622 = vsel %vm425, %v255, 0
  %v625 = vsel %vm425, %v256, 0
  %v628 = vsel %vm425, %v257, 0
  %v631 = vsel %vm425, %v258, 0
  %v634 = vsel %vm425, %v259, 0
  %v637 = vsel %vm425, %v260, 0
  %v640 = vsel %vm425, %v261, 0
  %v643 = vsel %vm425, %v262, 0
  %v646 = vsel %vm425, %v263, 0
  %v649 = vsel %vm425, %v264, 0
  %v652 = vsel %vm425, %v265, 0
  %v655 = vsel %vm425, %v266, 0
  %v658 = vsel %vm425, %v267, 0
  %v661 = vsel %vm425, %v268, 0
  %v664 = vsel %vm425, %v269, 0
  %v667 = vsel %vm425, %v270, 0
  %v670 = vsel %vm425, %v271, 0
  %v673 = vsel %vm425, %v272, 0
  %v676 = vsel %vm425, %v273, 0
  %v679 = vsel %vm425, %v274, 0
  %v682 = vsel %vm425, %v275, 0
  %v685 = vsel %vm425, %v276, 0
  %v688 = vsel %vm425, %v277, 0
  %v691 = vsel %vm425, %v278, 0
  %v694 = vsel %vm425, %v279, 0
  %v697 = vsel %vm425, %v280, 0
  %v700 = vsel %vm425, %v281, 0
  %v703 = vsel %vm425, %v282, 0
  %v706 = vsel %vm425, %v283, 0
  %v709 = vsel %vm425, %v284, 0
  %v712 = vsel %vm425, %v285, 0
  %v715 = vsel %vm425, %v286, 0
  %v718 = vsel %vm425, %v287, 0
  %v721 = vsel %vm425, %v288, 0
  %v724 = vsel %vm425, %v289, 0
  %v727 = vsel %vm425, %v290, 0
  %v730 = vsel %vm425, %v291, 0
  %v733 = vsel %vm425, %v292, 0
  %v736 = vsel %vm425, %v293, 0
  %v739 = vsel %vm425, %v294, 0
  %v742 = vsel %vm425, %v295, 0
  %v745 = vsel %vm425, %v296, 0
  %v748 = vsel %vm425, %v297, 0
  %v751 = vsel %vm425, %v298, 0
  %v754 = vsel %vm425, %v299, 0
  %v757 = vsel %vm425, %v300, 0
  %v760 = vsel %vm425, %v301, 0
  %v763 = vsel %vm425, %v302, 0
  %v766 = vsel %vm425, %v303, 0
  %v769 = vsel %vm425, %v304, 0
  %v772 = vsel %vm425, %v305, 0
  %v775 = vsel %vm425, %v306, 0
  %v778 = vsel %vm425, %v307, 0
  %v781 = vsel %vm425, %v308, 0
  %v784 = vsel %vm425, %v309, 0
  %v787 = vsel %vm425, %v310, 0
  %v790 = vsel %vm425, %v311, 0
  %v793 = vsel %vm425, %v312, 0
  %v796 = vsel %vm425, %v313, 0
  %v799 = vsel %vm425, %v314, 0
  %v802 = vsel %vm425, %v315, 0
  %v805 = vsel %vm425, %v316, 0
  %v808 = vsel %vm425, %v317, 0
  %v811 = vsel %vm425, %v318, 0
  %v814 = vsel %vm425, %v319, 0
  %v817 = vsel %vm425, %v320, 0
  %v820 = vsel %vm425, %v321, 0
  %v823 = vsel %vm425, %v322, 0
  %v826 = vsel %vm425, %v323, 0
  %v829 = vsel %vm425, %v324, 0
  %v832 = vsel %vm425, %v325, 0
  %v835 = vsel %vm425, %v326, 0
  %v838 = vsel %vm425, %v327, 0
  %v841 = vsel %vm425, %v328, 0
  %v844 = vsel %vm425, %v329, 0
  %v847 = vsel %vm425, %v330, 0
  %v850 = vsel %vm425, %v331, 0
  %v853 = vsel %vm425, %v332, 0
  %v856 = vsel %vm425, %v333, 0
  %v859 = vsel %vm425, %v334, 0
  %v862 = vsel %vm425, %v335, 0
  %v865 = vsel %vm425, %v336, 0
  %v868 = vsel %vm425, %v337, 0
  %v871 = vsel %vm425, %v338, 0
  %v874 = vsel %vm425, %v339, 0
  %v877 = vsel %vm425, %v340, 0
  %v880 = vsel %vm425, %v341, 0
  %v883 = vsel %vm425, %v342, 0
  %v886 = vsel %vm425, %v343, 0
  %v889 = vsel %vm425, %v344, 0
  %v892 = vsel %vm425, %v345, 0
  %v895 = vsel %vm425, %v346, 0
  %v898 = vsel %vm425, %v347, 0
  %v901 = vsel %vm425, %v348, 0
  %v904 = vsel %vm425, %v349, 0
  %v907 = vsel %vm425, %v350, 0
  %v910 = vsel %vm425, %v351, 0
  %v913 = vsel %vm425, %v352, 0
  %v916 = vsel %vm425, %v353, 0
  %v919 = vsel %vm425, %v354, 0
  %v922 = vsel %vm425, %v355, 0
  %v925 = vsel %vm425, %v356, 0
  %v928 = vsel %vm425, %v357, 0
  %v931 = vsel %vm425, %v358, 0
  %v934 = vsel %vm425, %v359, 0
  %v937 = vsel %vm425, %v360, 0
  %v940 = vsel %vm425, %v361, 0
  %v943 = vsel %vm425, %v362, 0
  %v946 = vsel %vm425, %v363, 0
  %v949 = vsel %vm425, %v364, 0
  %951 = vmatprep.subr.mxu0 0.0
  %952 = vmatpush1.xpose.msra.mxu0 %v430
  %953 = vmatprep.subr.mxu0 0.0
  %954 = vmatpush1.xpose.msra.mxu0 %v433
  %955 = vmatprep.subr.mxu0 0.0
  %956 = vmatpush1.xpose.msra.mxu0 %v436
  %957 = vmatprep.subr.mxu0 0.0
  %958 = vmatpush1.xpose.msra.mxu0 %v439
  %959 = vmatprep.subr.mxu0 0.0
  %960 = vmatpush1.xpose.msra.mxu0 %v442
  %961 = vmatprep.subr.mxu0 0.0
  %962 = vmatpush1.xpose.msra.mxu0 %v445
  %963 = vmatprep.subr.mxu0 0.0
  %964 = vmatpush1.xpose.msra.mxu0 %v448
  %965 = vmatprep.subr.mxu0 0.0
  %966 = vmatpush1.xpose.msra.mxu0 %v451
  %967 = vmatprep.subr.mxu0 0.0
  %968 = vmatpush1.xpose.msra.mxu0 %v454
  %969 = vmatprep.subr.mxu0 0.0
  %970 = vmatpush1.xpose.msra.mxu0 %v457
  %971 = vmatprep.subr.mxu0 0.0
  %972 = vmatpush1.xpose.msra.mxu0 %v460
  %973 = vmatprep.subr.mxu0 0.0
  %974 = vmatpush1.xpose.msra.mxu0 %v463
  %975 = vmatprep.subr.mxu0 0.0
  %976 = vmatpush1.xpose.msra.mxu0 %v466
  %977 = vmatprep.subr.mxu0 0.0
  %978 = vmatpush1.xpose.msra.mxu0 %v469
  %979 = vmatprep.subr.mxu0 0.0
  %980 = vmatpush1.xpose.msra.mxu0 %v472
  %981 = vmatprep.subr.mxu0 0.0
  %982 = vmatpush1.xpose.msra.mxu0 %v475
  %983 = vmatprep.subr.mxu0 0.0
  %984 = vmatpush1.xpose.msra.mxu0 %v478
  %985 = vmatprep.subr.mxu0 0.0
  %986 = vmatpush1.xpose.msra.mxu0 %v481
  %987 = vmatprep.subr.mxu0 0.0
  %988 = vmatpush1.xpose.msra.mxu0 %v484
  %989 = vmatprep.subr.mxu0 0.0
  %990 = vmatpush1.xpose.msra.mxu0 %v487
  %991 = vmatprep.subr.mxu0 0.0
  %992 = vmatpush1.xpose.msra.mxu0 %v490
  %993 = vmatprep.subr.mxu0 0.0
  %994 = vmatpush1.xpose.msra.mxu0 %v493
  %995 = vmatprep.subr.mxu0 0.0
  %996 = vmatpush1.xpose.msra.mxu0 %v496
  %997 = vmatprep.subr.mxu0 0.0
  %998 = vmatpush1.xpose.msra.mxu0 %v499
  %999 = vmatprep.subr.mxu0 0.0
  %1000 = vmatpush1.xpose.msra.mxu0 %v502
  %1001 = vmatprep.subr.mxu0 0.0
  %1002 = vmatpush1.xpose.msra.mxu0 %v505
  %1003 = vmatprep.subr.mxu0 0.0
  %1004 = vmatpush1.xpose.msra.mxu0 %v508
  %1005 = vmatprep.subr.mxu0 0.0
  %1006 = vmatpush1.xpose.msra.mxu0 %v511
  %1007 = vmatprep.subr.mxu0 0.0
  %1008 = vmatpush1.xpose.msra.mxu0 %v514
  %1009 = vmatprep.subr.mxu0 0.0
  %1010 = vmatpush1.xpose.msra.mxu0 %v517
  %1011 = vmatprep.subr.mxu0 0.0
  %1012 = vmatpush1.xpose.msra.mxu0 %v520
  %1013 = vmatprep.subr.mxu0 0.0
  %1014 = vmatpush1.xpose.msra.mxu0 %v523
  %1015 = vmatprep.mubr.f32.mxu0 0.0
  %1016 = vmatmul.mubr.f32.gmra.mrb[0].mxu0 %v427
  %v1017 = vpop.f32.mrb[0].mxu0
  %v1018 = vadd.f32 %v373, %v1017
  %v1019 = vpop.f32.mrb[0].mxu0
  %v1020 = vadd.f32 %v377, %v1019
  %1021 = vdwg.mxu0
  %1022 = vmatprep.subr.mxu0 0.0
  %1023 = vmatpush1.xpose.msra.mxu0 %v526
  %1024 = vmatprep.subr.mxu0 0.0
  %1025 = vmatpush1.xpose.msra.mxu0 %v529
  %1026 = vmatprep.subr.mxu0 0.0
  %1027 = vmatpush1.xpose.msra.mxu0 %v532
  %1028 = vmatprep.subr.mxu0 0.0
  %1029 = vmatpush1.xpose.msra.mxu0 %v535
  %1030 = vmatprep.subr.mxu0 0.0
  %1031 = vmatpush1.xpose.msra.mxu0 %v538
  %1032 = vmatprep.subr.mxu0 0.0
  %1033 = vmatpush1.xpose.msra.mxu0 %v541
  %1034 = vmatprep.subr.mxu0 0.0
  %1035 = vmatpush1.xpose.msra.mxu0 %v544
  %1036 = vmatprep.subr.mxu0 0.0
  %1037 = vmatpush1.xpose.msra.mxu0 %v547
  %1038 = vmatprep.subr.mxu0 0.0
  %1039 = vmatpush1.xpose.msra.mxu0 %v550
  %1040 = vmatprep.subr.mxu0 0.0
  %1041 = vmatpush1.xpose.msra.mxu0 %v553
  %1042 = vmatprep.subr.mxu0 0.0
  %1043 = vmatpush1.xpose.msra.mxu0 %v556
  %1044 = vmatprep.subr.mxu0 0.0
  %1045 = vmatpush1.xpose.msra.mxu0 %v559
  %1046 = vmatprep.subr.mxu0 0.0
  %1047 = vmatpush1.xpose.msra.mxu0 %v562
  %1048 = vmatprep.subr.mxu0 0.0
  %1049 = vmatpush1.xpose.msra.mxu0 %v565
  %1050 = vmatprep.subr.mxu0 0.0
  %1051 = vmatpush1.xpose.msra.mxu0 %v568
  %1052 = vmatprep.subr.mxu0 0.0
  %1053 = vmatpush1.xpose.msra.mxu0 %v571
  %1054 = vmatprep.subr.mxu0 0.0
  %1055 = vmatpush1.xpose.msra.mxu0 %v574
  %1056 = vmatprep.subr.mxu0 0.0
  %1057 = vmatpush1.xpose.msra.mxu0 %v577
  %1058 = vmatprep.subr.mxu0 0.0
  %1059 = vmatpush1.xpose.msra.mxu0 %v580
  %1060 = vmatprep.subr.mxu0 0.0
  %1061 = vmatpush1.xpose.msra.mxu0 %v583
  %1062 = vmatprep.subr.mxu0 0.0
  %1063 = vmatpush1.xpose.msra.mxu0 %v586
  %1064 = vmatprep.subr.mxu0 0.0
  %1065 = vmatpush1.xpose.msra.mxu0 %v589
  %1066 = vmatprep.subr.mxu0 0.0
  %1067 = vmatpush1.xpose.msra.mxu0 %v592
  %1068 = vmatprep.subr.mxu0 0.0
  %1069 = vmatpush1.xpose.msra.mxu0 %v595
  %1070 = vmatprep.subr.mxu0 0.0
  %1071 = vmatpush1.xpose.msra.mxu0 %v598
  %1072 = vmatprep.subr.mxu0 0.0
  %1073 = vmatpush1.xpose.msra.mxu0 %v601
  %1074 = vmatprep.subr.mxu0 0.0
  %1075 = vmatpush1.xpose.msra.mxu0 %v604
  %1076 = vmatprep.subr.mxu0 0.0
  %1077 = vmatpush1.xpose.msra.mxu0 %v607
  %1078 = vmatprep.subr.mxu0 0.0
  %1079 = vmatpush1.xpose.msra.mxu0 %v610
  %1080 = vmatprep.subr.mxu0 0.0
  %1081 = vmatpush1.xpose.msra.mxu0 %v613
  %1082 = vmatprep.subr.mxu0 0.0
  %1083 = vmatpush1.xpose.msra.mxu0 %v616
  %1084 = vmatprep.subr.mxu0 0.0
  %1085 = vmatpush1.xpose.msra.mxu0 %v619
  %1086 = vmatprep.mubr.f32.mxu0 0.0
  %1087 = vmatmul.mubr.f32.gmra.mrb[0].mxu0 %v427
  %v1088 = vpop.f32.mrb[0].mxu0
  %v1089 = vadd.f32 %v381, %v1088
  %v1090 = vpop.f32.mrb[0].mxu0
  %v1091 = vadd.f32 %v385, %v1090
  %1092 = vdwg.mxu0
  %1093 = vmatprep.subr.mxu0 0.0
  %1094 = vmatpush1.xpose.msra.mxu0 %v622
  %1095 = vmatprep.subr.mxu0 0.0
  %1096 = vmatpush1.xpose.msra.mxu0 %v625
  %1097 = vmatprep.subr.mxu0 0.0
  %1098 = vmatpush1.xpose.msra.mxu0 %v628
  %1099 = vmatprep.subr.mxu0 0.0
  %1100 = vmatpush1.xpose.msra.mxu0 %v631
  %1101 = vmatprep.subr.mxu0 0.0
  %1102 = vmatpush1.xpose.msra.mxu0 %v634
  %1103 = vmatprep.subr.mxu0 0.0
  %1104 = vmatpush1.xpose.msra.mxu0 %v637
  %1105 = vmatprep.subr.mxu0 0.0
  %1106 = vmatpush1.xpose.msra.mxu0 %v640
  %1107 = vmatprep.subr.mxu0 0.0
  %1108 = vmatpush1.xpose.msra.mxu0 %v643
  %1109 = vmatprep.subr.mxu0 0.0
  %1110 = vmatpush1.xpose.msra.mxu0 %v646
  %1111 = vmatprep.subr.mxu0 0.0
  %1112 = vmatpush1.xpose.msra.mxu0 %v649
  %1113 = vmatprep.subr.mxu0 0.0
  %1114 = vmatpush1.xpose.msra.mxu0 %v652
  %1115 = vmatprep.subr.mxu0 0.0
  %1116 = vmatpush1.xpose.msra.mxu0 %v655
  %1117 = vmatprep.subr.mxu0 0.0
  %1118 = vmatpush1.xpose.msra.mxu0 %v658
  %1119 = vmatprep.subr.mxu0 0.0
  %1120 = vmatpush1.xpose.msra.mxu0 %v661
  %1121 = vmatprep.subr.mxu0 0.0
  %1122 = vmatpush1.xpose.msra.mxu0 %v664
  %1123 = vmatprep.subr.mxu0 0.0
  %1124 = vmatpush1.xpose.msra.mxu0 %v667
  %1125 = vmatprep.subr.mxu0 0.0
  %1126 = vmatpush1.xpose.msra.mxu0 %v670
  %1127 = vmatprep.subr.mxu0 0.0
  %1128 = vmatpush1.xpose.msra.mxu0 %v673
  %1129 = vmatprep.subr.mxu0 0.0
  %1130 = vmatpush1.xpose.msra.mxu0 %v676
  %1131 = vmatprep.subr.mxu0 0.0
  %1132 = vmatpush1.xpose.msra.mxu0 %v679
  %1133 = vmatprep.subr.mxu0 0.0
  %1134 = vmatpush1.xpose.msra.mxu0 %v682
  %1135 = vmatprep.subr.mxu0 0.0
  %1136 = vmatpush1.xpose.msra.mxu0 %v685
  %1137 = vmatprep.subr.mxu0 0.0
  %1138 = vmatpush1.xpose.msra.mxu0 %v688
  %1139 = vmatprep.subr.mxu0 0.0
  %1140 = vmatpush1.xpose.msra.mxu0 %v691
  %1141 = vmatprep.subr.mxu0 0.0
  %1142 = vmatpush1.xpose.msra.mxu0 %v694
  %1143 = vmatprep.subr.mxu0 0.0
  %1144 = vmatpush1.xpose.msra.mxu0 %v697
  %1145 = vmatprep.subr.mxu0 0.0
  %1146 = vmatpush1.xpose.msra.mxu0 %v700
  %1147 = vmatprep.subr.mxu0 0.0
  %1148 = vmatpush1.xpose.msra.mxu0 %v703
  %1149 = vmatprep.subr.mxu0 0.0
  %1150 = vmatpush1.xpose.msra.mxu0 %v706
  %1151 = vmatprep.subr.mxu0 0.0
  %1152 = vmatpush1.xpose.msra.mxu0 %v709
  %1153 = vmatprep.subr.mxu0 0.0
  %1154 = vmatpush1.xpose.msra.mxu0 %v712
  %1155 = vmatprep.subr.mxu0 0.0
  %1156 = vmatpush1.xpose.msra.mxu0 %v715
  %1157 = vmatprep.mubr.f32.mxu0 0.0
  %1158 = vmatmul.mubr.f32.gmra.mrb[0].mxu0 %v427
  %v1159 = vpop.f32.mrb[0].mxu0
  %v1160 = vadd.f32 %v389, %v1159
  %v1161 = vpop.f32.mrb[0].mxu0
  %v1162 = vadd.f32 %v393, %v1161
  %1163 = vdwg.mxu0
  %1164 = vmatprep.subr.mxu0 0.0
  %1165 = vmatpush1.xpose.msra.mxu0 %v718
  %1166 = vmatprep.subr.mxu0 0.0
  %1167 = vmatpush1.xpose.msra.mxu0 %v721
  %1168 = vmatprep.subr.mxu0 0.0
  %1169 = vmatpush1.xpose.msra.mxu0 %v724
  %1170 = vmatprep.subr.mxu0 0.0
  %1171 = vmatpush1.xpose.msra.mxu0 %v727
  %1172 = vmatprep.subr.mxu0 0.0
  %1173 = vmatpush1.xpose.msra.mxu0 %v730
  %1174 = vmatprep.subr.mxu0 0.0
  %1175 = vmatpush1.xpose.msra.mxu0 %v733
  %1176 = vmatprep.subr.mxu0 0.0
  %1177 = vmatpush1.xpose.msra.mxu0 %v736
  %1178 = vmatprep.subr.mxu0 0.0
  %1179 = vmatpush1.xpose.msra.mxu0 %v739
  %1180 = vmatprep.subr.mxu0 0.0
  %1181 = vmatpush1.xpose.msra.mxu0 %v742
  %1182 = vmatprep.subr.mxu0 0.0
  %1183 = vmatpush1.xpose.msra.mxu0 %v745
  %1184 = vmatprep.subr.mxu0 0.0
  %1185 = vmatpush1.xpose.msra.mxu0 %v748
  %1186 = vmatprep.subr.mxu0 0.0
  %1187 = vmatpush1.xpose.msra.mxu0 %v751
  %1188 = vmatprep.subr.mxu0 0.0
  %1189 = vmatpush1.xpose.msra.mxu0 %v754
  %1190 = vmatprep.subr.mxu0 0.0
  %1191 = vmatpush1.xpose.msra.mxu0 %v757
  %1192 = vmatprep.subr.mxu0 0.0
  %1193 = vmatpush1.xpose.msra.mxu0 %v760
  %1194 = vmatprep.subr.mxu0 0.0
  %1195 = vmatpush1.xpose.msra.mxu0 %v763
  %1196 = vmatprep.subr.mxu0 0.0
  %1197 = vmatpush1.xpose.msra.mxu0 %v766
  %1198 = vmatprep.subr.mxu0 0.0
  %1199 = vmatpush1.xpose.msra.mxu0 %v769
  %1200 = vmatprep.subr.mxu0 0.0
  %1201 = vmatpush1.xpose.msra.mxu0 %v772
  %1202 = vmatprep.subr.mxu0 0.0
  %1203 = vmatpush1.xpose.msra.mxu0 %v775
  %1204 = vmatprep.subr.mxu0 0.0
  %1205 = vmatpush1.xpose.msra.mxu0 %v778
  %1206 = vmatprep.subr.mxu0 0.0
  %1207 = vmatpush1.xpose.msra.mxu0 %v781
  %1208 = vmatprep.subr.mxu0 0.0
  %1209 = vmatpush1.xpose.msra.mxu0 %v784
  %1210 = vmatprep.subr.mxu0 0.0
  %1211 = vmatpush1.xpose.msra.mxu0 %v787
  %1212 = vmatprep.subr.mxu0 0.0
  %1213 = vmatpush1.xpose.msra.mxu0 %v790
  %1214 = vmatprep.subr.mxu0 0.0
  %1215 = vmatpush1.xpose.msra.mxu0 %v793
  %1216 = vmatprep.subr.mxu0 0.0
  %1217 = vmatpush1.xpose.msra.mxu0 %v796
  %1218 = vmatprep.subr.mxu0 0.0
  %1219 = vmatpush1.xpose.msra.mxu0 %v799
  %1220 = vmatprep.subr.mxu0 0.0
  %1221 = vmatpush1.xpose.msra.mxu0 %v802
  %1222 = vmatprep.subr.mxu0 0.0
  %1223 = vmatpush1.xpose.msra.mxu0 %v805
  %1224 = vmatprep.subr.mxu0 0.0
  %1225 = vmatpush1.xpose.msra.mxu0 %v808
  %1226 = vmatprep.subr.mxu0 0.0
  %1227 = vmatpush1.xpose.msra.mxu0 %v811
  %1228 = vmatprep.mubr.f32.mxu0 0.0
  %1229 = vmatmul.mubr.f32.gmra.mrb[0].mxu0 %v427
  %v1230 = vpop.f32.mrb[0].mxu0
  %v1231 = vadd.f32 %v397, %v1230
  %v1232 = vpop.f32.mrb[0].mxu0
  %v1233 = vadd.f32 %v401, %v1232
  %1234 = vdwg.mxu0
  %1235 = vmatprep.subr.mxu0 0.0
  %1236 = vmatpush1.xpose.msra.mxu0 %v814
  %1237 = vmatprep.subr.mxu0 0.0
  %1238 = vmatpush1.xpose.msra.mxu0 %v817
  %1239 = vmatprep.subr.mxu0 0.0
  %1240 = vmatpush1.xpose.msra.mxu0 %v820
  %1241 = vmatprep.subr.mxu0 0.0
  %1242 = vmatpush1.xpose.msra.mxu0 %v823
  %1243 = vmatprep.subr.mxu0 0.0
  %1244 = vmatpush1.xpose.msra.mxu0 %v826
  %1245 = vmatprep.subr.mxu0 0.0
  %1246 = vmatpush1.xpose.msra.mxu0 %v829
  %1247 = vmatprep.subr.mxu0 0.0
  %1248 = vmatpush1.xpose.msra.mxu0 %v832
  %1249 = vmatprep.subr.mxu0 0.0
  %1250 = vmatpush1.xpose.msra.mxu0 %v835
  %1251 = vmatprep.subr.mxu0 0.0
  %1252 = vmatpush1.xpose.msra.mxu0 %v838
  %1253 = vmatprep.subr.mxu0 0.0
  %1254 = vmatpush1.xpose.msra.mxu0 %v841
  %1255 = vmatprep.subr.mxu0 0.0
  %1256 = vmatpush1.xpose.msra.mxu0 %v844
  %1257 = vmatprep.subr.mxu0 0.0
  %1258 = vmatpush1.xpose.msra.mxu0 %v847
  %1259 = vmatprep.subr.mxu0 0.0
  %1260 = vmatpush1.xpose.msra.mxu0 %v850
  %1261 = vmatprep.subr.mxu0 0.0
  %1262 = vmatpush1.xpose.msra.mxu0 %v853
  %1263 = vmatprep.subr.mxu0 0.0
  %1264 = vmatpush1.xpose.msra.mxu0 %v856
  %1265 = vmatprep.subr.mxu0 0.0
  %1266 = vmatpush1.xpose.msra.mxu0 %v859
  %1267 = vmatprep.subr.mxu0 0.0
  %1268 = vmatpush1.xpose.msra.mxu0 %v862
  %1269 = vmatprep.subr.mxu0 0.0
  %1270 = vmatpush1.xpose.msra.mxu0 %v865
  %1271 = vmatprep.subr.mxu0 0.0
  %1272 = vmatpush1.xpose.msra.mxu0 %v868
  %1273 = vmatprep.subr.mxu0 0.0
  %1274 = vmatpush1.xpose.msra.mxu0 %v871
  %1275 = vmatprep.subr.mxu0 0.0
  %1276 = vmatpush1.xpose.msra.mxu0 %v874
  %1277 = vmatprep.subr.mxu0 0.0
  %1278 = vmatpush1.xpose.msra.mxu0 %v877
  %1279 = vmatprep.subr.mxu0 0.0
  %1280 = vmatpush1.xpose.msra.mxu0 %v880
  %1281 = vmatprep.subr.mxu0 0.0
  %1282 = vmatpush1.xpose.msra.mxu0 %v883
  %1283 = vmatprep.subr.mxu0 0.0
  %1284 = vmatpush1.xpose.msra.mxu0 %v886
  %1285 = vmatprep.subr.mxu0 0.0
  %1286 = vmatpush1.xpose.msra.mxu0 %v889
  %1287 = vmatprep.subr.mxu0 0.0
  %1288 = vmatpush1.xpose.msra.mxu0 %v892
  %1289 = vmatprep.subr.mxu0 0.0
  %1290 = vmatpush1.xpose.msra.mxu0 %v895
  %1291 = vmatprep.subr.mxu0 0.0
  %1292 = vmatpush1.xpose.msra.mxu0 %v898
  %1293 = vmatprep.subr.mxu0 0.0
  %1294 = vmatpush1.xpose.msra.mxu0 %v901
  %1295 = vmatprep.subr.mxu0 0.0
  %1296 = vmatpush1.xpose.msra.mxu0 %v904
  %1297 = vmatprep.subr.mxu0 0.0
  %1298 = vmatpush1.xpose.msra.mxu0 %v907
  %1299 = vmatprep.mubr.f32.mxu0 0.0
  %1300 = vmatmul.mubr.f32.gmra.mrb[0].mxu0 %v427
  %v1301 = vpop.f32.mrb[0].mxu0
  %v1302 = vadd.f32 %v405, %v1301
  %v1303 = vpop.f32.mrb[0].mxu0
  %v1304 = vadd.f32 %v409, %v1303
  %1305 = vdwg.mxu0
  %1306 = vmatprep.subr.mxu0 0.0
  %1307 = vmatpush1.xpose.msra.mxu0 %v910
  %1308 = vmatprep.subr.mxu0 0.0
  %1309 = vmatpush1.xpose.msra.mxu0 %v913
  %1310 = vmatprep.subr.mxu0 0.0
  %1311 = vmatpush1.xpose.msra.mxu0 %v916
  %1312 = vmatprep.subr.mxu0 0.0
  %1313 = vmatpush1.xpose.msra.mxu0 %v919
  %1314 = vmatprep.subr.mxu0 0.0
  %1315 = vmatpush1.xpose.msra.mxu0 %v922
  %1316 = vmatprep.subr.mxu0 0.0
  %1317 = vmatpush1.xpose.msra.mxu0 %v925
  %1318 = vmatprep.subr.mxu0 0.0
  %1319 = vmatpush1.xpose.msra.mxu0 %v928
  %1320 = vmatprep.subr.mxu0 0.0
  %1321 = vmatpush1.xpose.msra.mxu0 %v931
  %1322 = vmatprep.subr.mxu0 0.0
  %1323 = vmatpush1.xpose.msra.mxu0 %v934
  %1324 = vmatprep.subr.mxu0 0.0
  %1325 = vmatpush1.xpose.msra.mxu0 %v937
  %1326 = vmatprep.subr.mxu0 0.0
  %1327 = vmatpush1.xpose.msra.mxu0 %v940
  %1328 = vmatprep.subr.mxu0 0.0
  %1329 = vmatpush1.xpose.msra.mxu0 %v943
  %1330 = vmatprep.subr.mxu0 0.0
  %1331 = vmatpush1.xpose.msra.mxu0 %v946
  %1332 = vmatprep.subr.mxu0 0.0
  %1333 = vmatpush1.xpose.msra.mxu0 %v949
  %1334 = vmatprep.subr.mxu0 0.0
  %1335 = vmatpush1.xpose.msra.mxu0 0.0
  %1336 = vmatprep.subr.mxu0 0.0
  %1337 = vmatpush1.xpose.msra.mxu0 0.0
  %1338 = vmatprep.subr.mxu0 0.0
  %1339 = vmatpush1.xpose.msra.mxu0 0.0
  %1340 = vmatprep.subr.mxu0 0.0
  %1341 = vmatpush1.xpose.msra.mxu0 0.0
  %1342 = vmatprep.subr.mxu0 0.0
  %1343 = vmatpush1.xpose.msra.mxu0 0.0
  %1344 = vmatprep.subr.mxu0 0.0
  %1345 = vmatpush1.xpose.msra.mxu0 0.0
  %1346 = vmatprep.subr.mxu0 0.0
  %1347 = vmatpush1.xpose.msra.mxu0 0.0
  %1348 = vmatprep.subr.mxu0 0.0
  %1349 = vmatpush1.xpose.msra.mxu0 0.0
  %1350 = vmatprep.subr.mxu0 0.0
  %1351 = vmatpush1.xpose.msra.mxu0 0.0
  %1352 = vmatprep.subr.mxu0 0.0
  %1353 = vmatpush1.xpose.msra.mxu0 0.0
  %1354 = vmatprep.subr.mxu0 0.0
  %1355 = vmatpush1.xpose.msra.mxu0 0.0
  %1356 = vmatprep.subr.mxu0 0.0
  %1357 = vmatpush1.xpose.msra.mxu0 0.0
  %1358 = vmatprep.subr.mxu0 0.0
  %1359 = vmatpush1.xpose.msra.mxu0 0.0
  %1360 = vmatprep.subr.mxu0 0.0
  %1361 = vmatpush1.xpose.msra.mxu0 0.0
  %1362 = vmatprep.subr.mxu0 0.0
  %1363 = vmatpush1.xpose.msra.mxu0 0.0
  %1364 = vmatprep.subr.mxu0 0.0
  %1365 = vmatpush1.xpose.msra.mxu0 0.0
  %1366 = vmatprep.subr.mxu0 0.0
  %1367 = vmatpush1.xpose.msra.mxu0 0.0
  %1368 = vmatprep.subr.mxu0 0.0
  %1369 = vmatpush1.xpose.msra.mxu0 0.0
  %1370 = vmatprep.mubr.f32.mxu0 0.0
  %1371 = vmatmul.mubr.f32.gmra.mrb[0].mxu0 %v427
  %v1372 = vpop.f32.mrb[0].mxu0
  %v1373 = vadd.f32 %v413, %v1372
  %v1374 = vpop.f32.mrb[0].mxu0
  %1375 = vdwg.mxu0
  %v1376 = vsub.f32 0.0, %v1018
  %v1377 = vsub.f32 0.0, %v1020
  %v1378 = vsub.f32 0.0, %v1089
  %v1379 = vsub.f32 0.0, %v1091
  %v1380 = vsub.f32 0.0, %v1160
  %v1381 = vsub.f32 0.0, %v1162
  %v1382 = vsub.f32 0.0, %v1231
  %v1383 = vsub.f32 0.0, %v1233
  %v1384 = vsub.f32 0.0, %v1302
  %v1385 = vsub.f32 0.0, %v1304
  %v1386 = vsub.f32 0.0, %v1373
  %v1387 = vmul.f32 %v1376, 1.442695
  %v1388 = vpow.pop %v1387
  %v1389 = vmul.f32 %v1377, 1.442695
  %v1390 = vpow.pop %v1389
  %v1391 = vmul.f32 %v1378, 1.442695
  %v1392 = vpow.pop %v1391
  %v1393 = vmul.f32 %v1379, 1.442695
  %v1394 = vpow.pop %v1393
  %v1395 = vmul.f32 %v1380, 1.442695
  %v1396 = vpow.pop %v1395
  %v1397 = vmul.f32 %v1381, 1.442695
  %v1398 = vpow.pop %v1397
  %v1399 = vmul.f32 %v1382, 1.442695
  %v1400 = vpow.pop %v1399
  %v1401 = vmul.f32 %v1383, 1.442695
  %v1402 = vpow.pop %v1401
  %v1403 = vmul.f32 %v1384, 1.442695
  %v1404 = vpow.pop %v1403
  %v1405 = vmul.f32 %v1385, 1.442695
  %v1406 = vpow.pop %v1405
  %v1407 = vmul.f32 %v1386, 1.442695
  %v1408 = vpow.pop %v1407
  %v1409 = vadd.f32 %v1388, 1.0
  %v1410 = vadd.f32 %v1390, 1.0
  %v1411 = vadd.f32 %v1392, 1.0
  %v1412 = vadd.f32 %v1394, 1.0
  %v1413 = vadd.f32 %v1396, 1.0
  %v1414 = vadd.f32 %v1398, 1.0
  %v1415 = vadd.f32 %v1400, 1.0
  %v1416 = vadd.f32 %v1402, 1.0
  %v1417 = vadd.f32 %v1404, 1.0
  %v1418 = vadd.f32 %v1406, 1.0
  %v1419 = vadd.f32 %v1408, 1.0
  %v1420 = vrcp.pop %v1409
  %v1421 = vmul.f32 1.0, %v1420
  %v1422 = vrcp.pop %v1410
  %v1423 = vmul.f32 1.0, %v1422
  %v1424 = vrcp.pop %v1411
  %v1425 = vmul.f32 1.0, %v1424
  %v1426 = vrcp.pop %v1412
  %v1427 = vmul.f32 1.0, %v1426
  %v1428 = vrcp.pop %v1413
  %v1429 = vmul.f32 1.0, %v1428
  %v1430 = vrcp.pop %v1414
  %v1431 = vmul.f32 1.0, %v1430
  %v1432 = vrcp.pop %v1415
  %v1433 = vmul.f32 1.0, %v1432
  %v1434 = vrcp.pop %v1416
  %v1435 = vmul.f32 1.0, %v1434
  %v1436 = vrcp.pop %v1417
  %v1437 = vmul.f32 1.0, %v1436
  %v1438 = vrcp.pop %v1418
  %v1439 = vmul.f32 1.0, %v1438
  %v1440 = vrcp.pop %v1419
  %v1441 = vmul.f32 1.0, %v1440
  %v1442 = vlaneseq
  %v1443 = vshrl.u32 %v1442, 7
  %v1444 = vsub.s32 0, %v1443
  %v1445 = vrot.slane %v1421, %v1444
  %v1446 = vlaneseq
  %v1447 = vshrl.u32 %v1446, 7
  %v1448 = vsub.s32 0, %v1447
  %v1449 = vrot.slane %v1423, %v1448
  %v1450 = vlaneseq
  %v1451 = vshrl.u32 %v1450, 7
  %v1452 = vsub.s32 0, %v1451
  %v1453 = vrot.slane %v1425, %v1452
  %v1454 = vlaneseq
  %v1455 = vshrl.u32 %v1454, 7
  %v1456 = vsub.s32 0, %v1455
  %v1457 = vrot.slane %v1427, %v1456
  %v1458 = vlaneseq
  %v1459 = vshrl.u32 %v1458, 7
  %v1460 = vsub.s32 0, %v1459
  %v1461 = vrot.slane %v1429, %v1460
  %v1462 = vlaneseq
  %v1463 = vshrl.u32 %v1462, 7
  %v1464 = vsub.s32 0, %v1463
  %v1465 = vrot.slane %v1431, %v1464
  %v1466 = vlaneseq
  %v1467 = vshrl.u32 %v1466, 7
  %v1468 = vsub.s32 0, %v1467
  %v1469 = vrot.slane %v1433, %v1468
  %v1470 = vlaneseq
  %v1471 = vshrl.u32 %v1470, 7
  %v1472 = vsub.s32 0, %v1471
  %v1473 = vrot.slane %v1435, %v1472
  %v1474 = vlaneseq
  %v1475 = vshrl.u32 %v1474, 7
  %v1476 = vsub.s32 0, %v1475
  %v1477 = vrot.slane %v1437, %v1476
  %v1478 = vlaneseq
  %v1479 = vshrl.u32 %v1478, 7
  %v1480 = vsub.s32 0, %v1479
  %v1481 = vrot.slane %v1439, %v1480
  %v1482 = vlaneseq
  %v1483 = vshrl.u32 %v1482, 7
  %v1484 = vsub.s32 0, %v1483
  %v1485 = vrot.slane %v1441, %v1484
  %1486 = vxpose.xlu0.b32.start [1/16] %v1445, 128
  %1487 = vxpose.xlu0.b32.cont [2/16] 0.0, 128
  %1488 = vxpose.xlu0.b32.cont [3/16] 0.0, 128
  %1489 = vxpose.xlu0.b32.cont [4/16] 0.0, 128
  %1490 = vxpose.xlu0.b32.cont [5/16] 0.0, 128
  %1491 = vxpose.xlu0.b32.cont [6/16] 0.0, 128
  %1492 = vxpose.xlu0.b32.cont [7/16] 0.0, 128
  %1493 = vxpose.xlu0.b32.cont [8/16] 0.0, 128
  %1494 = vxpose.xlu0.b32.cont [9/16] 0.0, 128
  %1495 = vxpose.xlu0.b32.cont [10/16] 0.0, 128
  %1496 = vxpose.xlu0.b32.cont [11/16] 0.0, 128
  %1497 = vxpose.xlu0.b32.cont [12/16] 0.0, 128
  %1498 = vxpose.xlu0.b32.cont [13/16] 0.0, 128
  %1499 = vxpose.xlu0.b32.cont [14/16] 0.0, 128
  %1500 = vxpose.xlu0.b32.cont [15/16] 0.0, 128
  %1501 = vxpose.xlu0.b32.end [16/16] 0.0, 128
  %v1502 = vpop.trf.xlu0
  %v1503 = vpop.trf.xlu0
  %v1504 = vpop.trf.xlu0
  %v1505 = vpop.trf.xlu0
  %v1506 = vpop.trf.xlu0
  %v1507 = vpop.trf.xlu0
  %v1508 = vpop.trf.xlu0
  %v1509 = vpop.trf.xlu0
  %v1510 = vpop.trf.xlu0
  %v1511 = vpop.trf.xlu0
  %v1512 = vpop.trf.xlu0
  %v1513 = vpop.trf.xlu0
  %v1514 = vpop.trf.xlu0
  %v1515 = vpop.trf.xlu0
  %v1516 = vpop.trf.xlu0
  %v1517 = vpop.trf.xlu0
  %1518 = vxpose.xlu0.b32.start [1/16] %v1449, 128
  %1519 = vxpose.xlu0.b32.cont [2/16] 0.0, 128
  %1520 = vxpose.xlu0.b32.cont [3/16] 0.0, 128
  %1521 = vxpose.xlu0.b32.cont [4/16] 0.0, 128
  %1522 = vxpose.xlu0.b32.cont [5/16] 0.0, 128
  %1523 = vxpose.xlu0.b32.cont [6/16] 0.0, 128
  %1524 = vxpose.xlu0.b32.cont [7/16] 0.0, 128
  %1525 = vxpose.xlu0.b32.cont [8/16] 0.0, 128
  %1526 = vxpose.xlu0.b32.cont [9/16] 0.0, 128
  %1527 = vxpose.xlu0.b32.cont [10/16] 0.0, 128
  %1528 = vxpose.xlu0.b32.cont [11/16] 0.0, 128
  %1529 = vxpose.xlu0.b32.cont [12/16] 0.0, 128
  %1530 = vxpose.xlu0.b32.cont [13/16] 0.0, 128
  %1531 = vxpose.xlu0.b32.cont [14/16] 0.0, 128
  %1532 = vxpose.xlu0.b32.cont [15/16] 0.0, 128
  %1533 = vxpose.xlu0.b32.end [16/16] 0.0, 128
  %v1534 = vpop.trf.xlu0
  %v1535 = vpop.trf.xlu0
  %v1536 = vpop.trf.xlu0
  %v1537 = vpop.trf.xlu0
  %v1538 = vpop.trf.xlu0
  %v1539 = vpop.trf.xlu0
  %v1540 = vpop.trf.xlu0
  %v1541 = vpop.trf.xlu0
  %v1542 = vpop.trf.xlu0
  %v1543 = vpop.trf.xlu0
  %v1544 = vpop.trf.xlu0
  %v1545 = vpop.trf.xlu0
  %v1546 = vpop.trf.xlu0
  %v1547 = vpop.trf.xlu0
  %v1548 = vpop.trf.xlu0
  %v1549 = vpop.trf.xlu0
  %1550 = vxpose.xlu0.b32.start [1/16] %v1453, 128
  %1551 = vxpose.xlu0.b32.cont [2/16] 0.0, 128
  %1552 = vxpose.xlu0.b32.cont [3/16] 0.0, 128
  %1553 = vxpose.xlu0.b32.cont [4/16] 0.0, 128
  %1554 = vxpose.xlu0.b32.cont [5/16] 0.0, 128
  %1555 = vxpose.xlu0.b32.cont [6/16] 0.0, 128
  %1556 = vxpose.xlu0.b32.cont [7/16] 0.0, 128
  %1557 = vxpose.xlu0.b32.cont [8/16] 0.0, 128
  %1558 = vxpose.xlu0.b32.cont [9/16] 0.0, 128
  %1559 = vxpose.xlu0.b32.cont [10/16] 0.0, 128
  %1560 = vxpose.xlu0.b32.cont [11/16] 0.0, 128
  %1561 = vxpose.xlu0.b32.cont [12/16] 0.0, 128
  %1562 = vxpose.xlu0.b32.cont [13/16] 0.0, 128
  %1563 = vxpose.xlu0.b32.cont [14/16] 0.0, 128
  %1564 = vxpose.xlu0.b32.cont [15/16] 0.0, 128
  %1565 = vxpose.xlu0.b32.end [16/16] 0.0, 128
  %v1566 = vpop.trf.xlu0
  %v1567 = vpop.trf.xlu0
  %v1568 = vpop.trf.xlu0
  %v1569 = vpop.trf.xlu0
  %v1570 = vpop.trf.xlu0
  %v1571 = vpop.trf.xlu0
  %v1572 = vpop.trf.xlu0
  %v1573 = vpop.trf.xlu0
  %v1574 = vpop.trf.xlu0
  %v1575 = vpop.trf.xlu0
  %v1576 = vpop.trf.xlu0
  %v1577 = vpop.trf.xlu0
  %v1578 = vpop.trf.xlu0
  %v1579 = vpop.trf.xlu0
  %v1580 = vpop.trf.xlu0
  %v1581 = vpop.trf.xlu0
  %1582 = vxpose.xlu0.b32.start [1/16] %v1457, 128
  %1583 = vxpose.xlu0.b32.cont [2/16] 0.0, 128
  %1584 = vxpose.xlu0.b32.cont [3/16] 0.0, 128
  %1585 = vxpose.xlu0.b32.cont [4/16] 0.0, 128
  %1586 = vxpose.xlu0.b32.cont [5/16] 0.0, 128
  %1587 = vxpose.xlu0.b32.cont [6/16] 0.0, 128
  %1588 = vxpose.xlu0.b32.cont [7/16] 0.0, 128
  %1589 = vxpose.xlu0.b32.cont [8/16] 0.0, 128
  %1590 = vxpose.xlu0.b32.cont [9/16] 0.0, 128
  %1591 = vxpose.xlu0.b32.cont [10/16] 0.0, 128
  %1592 = vxpose.xlu0.b32.cont [11/16] 0.0, 128
  %1593 = vxpose.xlu0.b32.cont [12/16] 0.0, 128
  %1594 = vxpose.xlu0.b32.cont [13/16] 0.0, 128
  %1595 = vxpose.xlu0.b32.cont [14/16] 0.0, 128
  %1596 = vxpose.xlu0.b32.cont [15/16] 0.0, 128
  %1597 = vxpose.xlu0.b32.end [16/16] 0.0, 128
  %v1598 = vpop.trf.xlu0
  %v1599 = vpop.trf.xlu0
  %v1600 = vpop.trf.xlu0
  %v1601 = vpop.trf.xlu0
  %v1602 = vpop.trf.xlu0
  %v1603 = vpop.trf.xlu0
  %v1604 = vpop.trf.xlu0
  %v1605 = vpop.trf.xlu0
  %v1606 = vpop.trf.xlu0
  %v1607 = vpop.trf.xlu0
  %v1608 = vpop.trf.xlu0
  %v1609 = vpop.trf.xlu0
  %v1610 = vpop.trf.xlu0
  %v1611 = vpop.trf.xlu0
  %v1612 = vpop.trf.xlu0
  %v1613 = vpop.trf.xlu0
  %1614 = vxpose.xlu0.b32.start [1/16] %v1461, 128
  %1615 = vxpose.xlu0.b32.cont [2/16] 0.0, 128
  %1616 = vxpose.xlu0.b32.cont [3/16] 0.0, 128
  %1617 = vxpose.xlu0.b32.cont [4/16] 0.0, 128
  %1618 = vxpose.xlu0.b32.cont [5/16] 0.0, 128
  %1619 = vxpose.xlu0.b32.cont [6/16] 0.0, 128
  %1620 = vxpose.xlu0.b32.cont [7/16] 0.0, 128
  %1621 = vxpose.xlu0.b32.cont [8/16] 0.0, 128
  %1622 = vxpose.xlu0.b32.cont [9/16] 0.0, 128
  %1623 = vxpose.xlu0.b32.cont [10/16] 0.0, 128
  %1624 = vxpose.xlu0.b32.cont [11/16] 0.0, 128
  %1625 = vxpose.xlu0.b32.cont [12/16] 0.0, 128
  %1626 = vxpose.xlu0.b32.cont [13/16] 0.0, 128
  %1627 = vxpose.xlu0.b32.cont [14/16] 0.0, 128
  %1628 = vxpose.xlu0.b32.cont [15/16] 0.0, 128
  %1629 = vxpose.xlu0.b32.end [16/16] 0.0, 128
  %v1630 = vpop.trf.xlu0
  %v1631 = vpop.trf.xlu0
  %v1632 = vpop.trf.xlu0
  %v1633 = vpop.trf.xlu0
  %v1634 = vpop.trf.xlu0
  %v1635 = vpop.trf.xlu0
  %v1636 = vpop.trf.xlu0
  %v1637 = vpop.trf.xlu0
  %v1638 = vpop.trf.xlu0
  %v1639 = vpop.trf.xlu0
  %v1640 = vpop.trf.xlu0
  %v1641 = vpop.trf.xlu0
  %v1642 = vpop.trf.xlu0
  %v1643 = vpop.trf.xlu0
  %v1644 = vpop.trf.xlu0
  %v1645 = vpop.trf.xlu0
  %1646 = vxpose.xlu0.b32.start [1/16] %v1465, 128
  %1647 = vxpose.xlu0.b32.cont [2/16] 0.0, 128
  %1648 = vxpose.xlu0.b32.cont [3/16] 0.0, 128
  %1649 = vxpose.xlu0.b32.cont [4/16] 0.0, 128
  %1650 = vxpose.xlu0.b32.cont [5/16] 0.0, 128
  %1651 = vxpose.xlu0.b32.cont [6/16] 0.0, 128
  %1652 = vxpose.xlu0.b32.cont [7/16] 0.0, 128
  %1653 = vxpose.xlu0.b32.cont [8/16] 0.0, 128
  %1654 = vxpose.xlu0.b32.cont [9/16] 0.0, 128
  %1655 = vxpose.xlu0.b32.cont [10/16] 0.0, 128
  %1656 = vxpose.xlu0.b32.cont [11/16] 0.0, 128
  %1657 = vxpose.xlu0.b32.cont [12/16] 0.0, 128
  %1658 = vxpose.xlu0.b32.cont [13/16] 0.0, 128
  %1659 = vxpose.xlu0.b32.cont [14/16] 0.0, 128
  %1660 = vxpose.xlu0.b32.cont [15/16] 0.0, 128
  %1661 = vxpose.xlu0.b32.end [16/16] 0.0, 128
  %v1662 = vpop.trf.xlu0
  %v1663 = vpop.trf.xlu0
  %v1664 = vpop.trf.xlu0
  %v1665 = vpop.trf.xlu0
  %v1666 = vpop.trf.xlu0
  %v1667 = vpop.trf.xlu0
  %v1668 = vpop.trf.xlu0
  %v1669 = vpop.trf.xlu0
  %v1670 = vpop.trf.xlu0
  %v1671 = vpop.trf.xlu0
  %v1672 = vpop.trf.xlu0
  %v1673 = vpop.trf.xlu0
  %v1674 = vpop.trf.xlu0
  %v1675 = vpop.trf.xlu0
  %v1676 = vpop.trf.xlu0
  %v1677 = vpop.trf.xlu0
  %1678 = vxpose.xlu0.b32.start [1/16] %v1469, 128
  %1679 = vxpose.xlu0.b32.cont [2/16] 0.0, 128
  %1680 = vxpose.xlu0.b32.cont [3/16] 0.0, 128
  %1681 = vxpose.xlu0.b32.cont [4/16] 0.0, 128
  %1682 = vxpose.xlu0.b32.cont [5/16] 0.0, 128
  %1683 = vxpose.xlu0.b32.cont [6/16] 0.0, 128
  %1684 = vxpose.xlu0.b32.cont [7/16] 0.0, 128
  %1685 = vxpose.xlu0.b32.cont [8/16] 0.0, 128
  %1686 = vxpose.xlu0.b32.cont [9/16] 0.0, 128
  %1687 = vxpose.xlu0.b32.cont [10/16] 0.0, 128
  %1688 = vxpose.xlu0.b32.cont [11/16] 0.0, 128
  %1689 = vxpose.xlu0.b32.cont [12/16] 0.0, 128
  %1690 = vxpose.xlu0.b32.cont [13/16] 0.0, 128
  %1691 = vxpose.xlu0.b32.cont [14/16] 0.0, 128
  %1692 = vxpose.xlu0.b32.cont [15/16] 0.0, 128
  %1693 = vxpose.xlu0.b32.end [16/16] 0.0, 128
  %v1694 = vpop.trf.xlu0
  %v1695 = vpop.trf.xlu0
  %v1696 = vpop.trf.xlu0
  %v1697 = vpop.trf.xlu0
  %v1698 = vpop.trf.xlu0
  %v1699 = vpop.trf.xlu0
  %v1700 = vpop.trf.xlu0
  %v1701 = vpop.trf.xlu0
  %v1702 = vpop.trf.xlu0
  %v1703 = vpop.trf.xlu0
  %v1704 = vpop.trf.xlu0
  %v1705 = vpop.trf.xlu0
  %v1706 = vpop.trf.xlu0
  %v1707 = vpop.trf.xlu0
  %v1708 = vpop.trf.xlu0
  %v1709 = vpop.trf.xlu0
  %1710 = vxpose.xlu0.b32.start [1/16] %v1473, 128
  %1711 = vxpose.xlu0.b32.cont [2/16] 0.0, 128
  %1712 = vxpose.xlu0.b32.cont [3/16] 0.0, 128
  %1713 = vxpose.xlu0.b32.cont [4/16] 0.0, 128
  %1714 = vxpose.xlu0.b32.cont [5/16] 0.0, 128
  %1715 = vxpose.xlu0.b32.cont [6/16] 0.0, 128
  %1716 = vxpose.xlu0.b32.cont [7/16] 0.0, 128
  %1717 = vxpose.xlu0.b32.cont [8/16] 0.0, 128
  %1718 = vxpose.xlu0.b32.cont [9/16] 0.0, 128
  %1719 = vxpose.xlu0.b32.cont [10/16] 0.0, 128
  %1720 = vxpose.xlu0.b32.cont [11/16] 0.0, 128
  %1721 = vxpose.xlu0.b32.cont [12/16] 0.0, 128
  %1722 = vxpose.xlu0.b32.cont [13/16] 0.0, 128
  %1723 = vxpose.xlu0.b32.cont [14/16] 0.0, 128
  %1724 = vxpose.xlu0.b32.cont [15/16] 0.0, 128
  %1725 = vxpose.xlu0.b32.end [16/16] 0.0, 128
  %v1726 = vpop.trf.xlu0
  %v1727 = vpop.trf.xlu0
  %v1728 = vpop.trf.xlu0
  %v1729 = vpop.trf.xlu0
  %v1730 = vpop.trf.xlu0
  %v1731 = vpop.trf.xlu0
  %v1732 = vpop.trf.xlu0
  %v1733 = vpop.trf.xlu0
  %v1734 = vpop.trf.xlu0
  %v1735 = vpop.trf.xlu0
  %v1736 = vpop.trf.xlu0
  %v1737 = vpop.trf.xlu0
  %v1738 = vpop.trf.xlu0
  %v1739 = vpop.trf.xlu0
  %v1740 = vpop.trf.xlu0
  %v1741 = vpop.trf.xlu0
  %1742 = vxpose.xlu0.b32.start [1/16] %v1477, 128
  %1743 = vxpose.xlu0.b32.cont [2/16] 0.0, 128
  %1744 = vxpose.xlu0.b32.cont [3/16] 0.0, 128
  %1745 = vxpose.xlu0.b32.cont [4/16] 0.0, 128
  %1746 = vxpose.xlu0.b32.cont [5/16] 0.0, 128
  %1747 = vxpose.xlu0.b32.cont [6/16] 0.0, 128
  %1748 = vxpose.xlu0.b32.cont [7/16] 0.0, 128
  %1749 = vxpose.xlu0.b32.cont [8/16] 0.0, 128
  %1750 = vxpose.xlu0.b32.cont [9/16] 0.0, 128
  %1751 = vxpose.xlu0.b32.cont [10/16] 0.0, 128
  %1752 = vxpose.xlu0.b32.cont [11/16] 0.0, 128
  %1753 = vxpose.xlu0.b32.cont [12/16] 0.0, 128
  %1754 = vxpose.xlu0.b32.cont [13/16] 0.0, 128
  %1755 = vxpose.xlu0.b32.cont [14/16] 0.0, 128
  %1756 = vxpose.xlu0.b32.cont [15/16] 0.0, 128
  %1757 = vxpose.xlu0.b32.end [16/16] 0.0, 128
  %v1758 = vpop.trf.xlu0
  %v1759 = vpop.trf.xlu0
  %v1760 = vpop.trf.xlu0
  %v1761 = vpop.trf.xlu0
  %v1762 = vpop.trf.xlu0
  %v1763 = vpop.trf.xlu0
  %v1764 = vpop.trf.xlu0
  %v1765 = vpop.trf.xlu0
  %v1766 = vpop.trf.xlu0
  %v1767 = vpop.trf.xlu0
  %v1768 = vpop.trf.xlu0
  %v1769 = vpop.trf.xlu0
  %v1770 = vpop.trf.xlu0
  %v1771 = vpop.trf.xlu0
  %v1772 = vpop.trf.xlu0
  %v1773 = vpop.trf.xlu0
  %1774 = vxpose.xlu0.b32.start [1/16] %v1481, 128
  %1775 = vxpose.xlu0.b32.cont [2/16] 0.0, 128
  %1776 = vxpose.xlu0.b32.cont [3/16] 0.0, 128
  %1777 = vxpose.xlu0.b32.cont [4/16] 0.0, 128
  %1778 = vxpose.xlu0.b32.cont [5/16] 0.0, 128
  %1779 = vxpose.xlu0.b32.cont [6/16] 0.0, 128
  %1780 = vxpose.xlu0.b32.cont [7/16] 0.0, 128
  %1781 = vxpose.xlu0.b32.cont [8/16] 0.0, 128
  %1782 = vxpose.xlu0.b32.cont [9/16] 0.0, 128
  %1783 = vxpose.xlu0.b32.cont [10/16] 0.0, 128
  %1784 = vxpose.xlu0.b32.cont [11/16] 0.0, 128
  %1785 = vxpose.xlu0.b32.cont [12/16] 0.0, 128
  %1786 = vxpose.xlu0.b32.cont [13/16] 0.0, 128
  %1787 = vxpose.xlu0.b32.cont [14/16] 0.0, 128
  %1788 = vxpose.xlu0.b32.cont [15/16] 0.0, 128
  %1789 = vxpose.xlu0.b32.end [16/16] 0.0, 128
  %v1790 = vpop.trf.xlu0
  %v1791 = vpop.trf.xlu0
  %v1792 = vpop.trf.xlu0
  %v1793 = vpop.trf.xlu0
  %v1794 = vpop.trf.xlu0
  %v1795 = vpop.trf.xlu0
  %v1796 = vpop.trf.xlu0
  %v1797 = vpop.trf.xlu0
  %v1798 = vpop.trf.xlu0
  %v1799 = vpop.trf.xlu0
  %v1800 = vpop.trf.xlu0
  %v1801 = vpop.trf.xlu0
  %v1802 = vpop.trf.xlu0
  %v1803 = vpop.trf.xlu0
  %v1804 = vpop.trf.xlu0
  %v1805 = vpop.trf.xlu0
  %1806 = vxpose.xlu0.b32.start [1/16] %v1485, 128
  %1807 = vxpose.xlu0.b32.cont [2/16] 0.0, 128
  %1808 = vxpose.xlu0.b32.cont [3/16] 0.0, 128
  %1809 = vxpose.xlu0.b32.cont [4/16] 0.0, 128
  %1810 = vxpose.xlu0.b32.cont [5/16] 0.0, 128
  %1811 = vxpose.xlu0.b32.cont [6/16] 0.0, 128
  %1812 = vxpose.xlu0.b32.cont [7/16] 0.0, 128
  %1813 = vxpose.xlu0.b32.cont [8/16] 0.0, 128
  %1814 = vxpose.xlu0.b32.cont [9/16] 0.0, 128
  %1815 = vxpose.xlu0.b32.cont [10/16] 0.0, 128
  %1816 = vxpose.xlu0.b32.cont [11/16] 0.0, 128
  %1817 = vxpose.xlu0.b32.cont [12/16] 0.0, 128
  %1818 = vxpose.xlu0.b32.cont [13/16] 0.0, 128
  %1819 = vxpose.xlu0.b32.cont [14/16] 0.0, 128
  %1820 = vxpose.xlu0.b32.cont [15/16] 0.0, 128
  %1821 = vxpose.xlu0.b32.end [16/16] 0.0, 128
  %v1822 = vpop.trf.xlu0
  %v1823 = vpop.trf.xlu0
  %v1824 = vpop.trf.xlu0
  %v1825 = vpop.trf.xlu0
  %v1826 = vpop.trf.xlu0
  %v1827 = vpop.trf.xlu0
  %v1828 = vpop.trf.xlu0
  %v1829 = vpop.trf.xlu0
  %v1830 = vpop.trf.xlu0
  %v1831 = vpop.trf.xlu0
  %v1832 = vpop.trf.xlu0
  %v1833 = vpop.trf.xlu0
  %v1834 = vpop.trf.xlu0
  %v1835 = vpop.trf.xlu0
  %v1836 = vpop.trf.xlu0
  %v1837 = vpop.trf.xlu0
  %v1838 = vld [vmem:[%s3] sm:$0xff]
  %v1839 = vld [vmem:[%s3 + $0x8] sm:$0xff]
  %v1840 = vld [vmem:[%s3 + $0x10] sm:$0xff]
  %v1841 = vld [vmem:[%s3 + $0x18] sm:$0xff]
  %v1842 = vld [vmem:[%s3 + $0x20] sm:$0xff]
  %v1843 = vld [vmem:[%s3 + $0x28] sm:$0xff]
  %v1844 = vld [vmem:[%s3 + $0x30] sm:$0xff]
  %v1845 = vld [vmem:[%s3 + $0x38] sm:$0xff]
  %v1846 = vld [vmem:[%s3 + $0x40] sm:$0xff]
  %v1847 = vld [vmem:[%s3 + $0x48] sm:$0xff]
  %v1848 = vld [vmem:[%s3 + $0x50] sm:$0xff]
  %v1849 = vld [vmem:[%s3 + $0x58] sm:$0xff]
  %v1850 = vld [vmem:[%s3 + $0x60] sm:$0xff]
  %v1851 = vld [vmem:[%s3 + $0x68] sm:$0xff]
  %v1852 = vld [vmem:[%s3 + $0x70] sm:$0xff]
  %v1853 = vld [vmem:[%s3 + $0x78] sm:$0xff]
  %v1854 = vld [vmem:[%s3 + $0x80] sm:$0xff]
  %v1855 = vld [vmem:[%s3 + $0x88] sm:$0xff]
  %v1856 = vld [vmem:[%s3 + $0x90] sm:$0xff]
  %v1857 = vld [vmem:[%s3 + $0x98] sm:$0xff]
  %v1858 = vld [vmem:[%s3 + $0xa0] sm:$0xff]
  %v1859 = vld [vmem:[%s3 + $0xa8] sm:$0xff]
  %v1860 = vld [vmem:[%s3 + $0xb0] sm:$0xff]
  %v1861 = vld [vmem:[%s3 + $0xb8] sm:$0xff]
  %v1862 = vld [vmem:[%s3 + $0xc0] sm:$0xff]
  %v1863 = vld [vmem:[%s3 + $0xc8] sm:$0xff]
  %v1864 = vld [vmem:[%s3 + $0xd0] sm:$0xff]
  %v1865 = vld [vmem:[%s3 + $0xd8] sm:$0xff]
  %v1866 = vld [vmem:[%s3 + $0xe0] sm:$0xff]
  %v1867 = vld [vmem:[%s3 + $0xe8] sm:$0xff]
  %v1868 = vld [vmem:[%s3 + $0xf0] sm:$0xff]
  %v1869 = vld [vmem:[%s3 + $0xf8] sm:$0xff]
  %v1870 = vld [vmem:[%s3 + $0x100] sm:$0xff]
  %v1871 = vld [vmem:[%s3 + $0x108] sm:$0xff]
  %v1872 = vld [vmem:[%s3 + $0x110] sm:$0xff]
  %v1873 = vld [vmem:[%s3 + $0x118] sm:$0xff]
  %v1874 = vld [vmem:[%s3 + $0x120] sm:$0xff]
  %v1875 = vld [vmem:[%s3 + $0x128] sm:$0xff]
  %v1876 = vld [vmem:[%s3 + $0x130] sm:$0xff]
  %v1877 = vld [vmem:[%s3 + $0x138] sm:$0xff]
  %v1878 = vld [vmem:[%s3 + $0x140] sm:$0xff]
  %v1879 = vld [vmem:[%s3 + $0x148] sm:$0xff]
  %v1880 = vld [vmem:[%s3 + $0x150] sm:$0xff]
  %v1881 = vld [vmem:[%s3 + $0x158] sm:$0xff]
  %v1882 = vld [vmem:[%s3 + $0x160] sm:$0xff]
  %v1883 = vld [vmem:[%s3 + $0x168] sm:$0xff]
  %v1884 = vld [vmem:[%s3 + $0x170] sm:$0xff]
  %v1885 = vld [vmem:[%s3 + $0x178] sm:$0xff]
  %v1886 = vld [vmem:[%s3 + $0x180] sm:$0xff]
  %v1887 = vld [vmem:[%s3 + $0x188] sm:$0xff]
  %v1888 = vld [vmem:[%s3 + $0x190] sm:$0xff]
  %v1889 = vld [vmem:[%s3 + $0x198] sm:$0xff]
  %v1890 = vld [vmem:[%s3 + $0x1a0] sm:$0xff]
  %v1891 = vld [vmem:[%s3 + $0x1a8] sm:$0xff]
  %v1892 = vld [vmem:[%s3 + $0x1b0] sm:$0xff]
  %v1893 = vld [vmem:[%s3 + $0x1b8] sm:$0xff]
  %v1894 = vld [vmem:[%s3 + $0x1c0] sm:$0xff]
  %v1895 = vld [vmem:[%s3 + $0x1c8] sm:$0xff]
  %v1896 = vld [vmem:[%s3 + $0x1d0] sm:$0xff]
  %v1897 = vld [vmem:[%s3 + $0x1d8] sm:$0xff]
  %v1898 = vld [vmem:[%s3 + $0x1e0] sm:$0xff]
  %v1899 = vld [vmem:[%s3 + $0x1e8] sm:$0xff]
  %v1900 = vld [vmem:[%s3 + $0x1f0] sm:$0xff]
  %v1901 = vld [vmem:[%s3 + $0x1f8] sm:$0xff]
  %v1902 = vld [vmem:[%s3 + $0x200] sm:$0xff]
  %v1903 = vld [vmem:[%s3 + $0x208] sm:$0xff]
  %v1904 = vld [vmem:[%s3 + $0x210] sm:$0xff]
  %v1905 = vld [vmem:[%s3 + $0x218] sm:$0xff]
  %v1906 = vld [vmem:[%s3 + $0x220] sm:$0xff]
  %v1907 = vld [vmem:[%s3 + $0x228] sm:$0xff]
  %v1908 = vld [vmem:[%s3 + $0x230] sm:$0xff]
  %v1909 = vld [vmem:[%s3 + $0x238] sm:$0xff]
  %v1910 = vld [vmem:[%s3 + $0x240] sm:$0xff]
  %v1911 = vld [vmem:[%s3 + $0x248] sm:$0xff]
  %v1912 = vld [vmem:[%s3 + $0x250] sm:$0xff]
  %v1913 = vld [vmem:[%s3 + $0x258] sm:$0xff]
  %v1914 = vld [vmem:[%s3 + $0x260] sm:$0xff]
  %v1915 = vld [vmem:[%s3 + $0x268] sm:$0xff]
  %v1916 = vld [vmem:[%s3 + $0x270] sm:$0xff]
  %v1917 = vld [vmem:[%s3 + $0x278] sm:$0xff]
  %v1918 = vld [vmem:[%s3 + $0x280] sm:$0xff]
  %v1919 = vld [vmem:[%s3 + $0x288] sm:$0xff]
  %v1920 = vld [vmem:[%s3 + $0x290] sm:$0xff]
  %v1921 = vld [vmem:[%s3 + $0x298] sm:$0xff]
  %v1922 = vld [vmem:[%s3 + $0x2a0] sm:$0xff]
  %v1923 = vld [vmem:[%s3 + $0x2a8] sm:$0xff]
  %v1924 = vld [vmem:[%s3 + $0x2b0] sm:$0xff]
  %v1925 = vld [vmem:[%s3 + $0x2b8] sm:$0xff]
  %v1926 = vld [vmem:[%s3 + $0x2c0] sm:$0xff]
  %v1927 = vld [vmem:[%s3 + $0x2c8] sm:$0xff]
  %v1928 = vld [vmem:[%s3 + $0x2d0] sm:$0xff]
  %v1929 = vld [vmem:[%s3 + $0x2d8] sm:$0xff]
  %v1930 = vld [vmem:[%s3 + $0x2e0] sm:$0xff]
  %v1931 = vld [vmem:[%s3 + $0x2e8] sm:$0xff]
  %v1932 = vld [vmem:[%s3 + $0x2f0] sm:$0xff]
  %v1933 = vld [vmem:[%s3 + $0x2f8] sm:$0xff]
  %v1934 = vld [vmem:[%s3 + $0x300] sm:$0xff]
  %v1935 = vld [vmem:[%s3 + $0x308] sm:$0xff]
  %v1936 = vld [vmem:[%s3 + $0x310] sm:$0xff]
  %v1937 = vld [vmem:[%s3 + $0x318] sm:$0xff]
  %v1938 = vld [vmem:[%s3 + $0x320] sm:$0xff]
  %v1939 = vld [vmem:[%s3 + $0x328] sm:$0xff]
  %v1940 = vld [vmem:[%s3 + $0x330] sm:$0xff]
  %v1941 = vld [vmem:[%s3 + $0x338] sm:$0xff]
  %v1942 = vld [vmem:[%s3 + $0x340] sm:$0xff]
  %v1943 = vld [vmem:[%s3 + $0x348] sm:$0xff]
  %v1944 = vld [vmem:[%s3 + $0x350] sm:$0xff]
  %v1945 = vld [vmem:[%s3 + $0x358] sm:$0xff]
  %v1946 = vld [vmem:[%s3 + $0x360] sm:$0xff]
  %v1947 = vld [vmem:[%s3 + $0x368] sm:$0xff]
  %v1948 = vld [vmem:[%s3 + $0x370] sm:$0xff]
  %v1949 = vld [vmem:[%s3 + $0x378] sm:$0xff]
  %v1950 = vld [vmem:[%s3 + $0x380] sm:$0xff]
  %v1951 = vld [vmem:[%s3 + $0x388] sm:$0xff]
  %v1952 = vld [vmem:[%s3 + $0x390] sm:$0xff]
  %v1953 = vld [vmem:[%s3 + $0x398] sm:$0xff]
  %v1954 = vld [vmem:[%s3 + $0x3a0] sm:$0xff]
  %v1955 = vld [vmem:[%s3 + $0x3a8] sm:$0xff]
  %v1956 = vld [vmem:[%s3 + $0x3b0] sm:$0xff]
  %v1957 = vld [vmem:[%s3 + $0x3b8] sm:$0xff]
  %v1958 = vld [vmem:[%s3 + $0x3c0] sm:$0xff]
  %v1959 = vld [vmem:[%s3 + $0x3c8] sm:$0xff]
  %v1960 = vld [vmem:[%s3 + $0x3d0] sm:$0xff]
  %v1961 = vld [vmem:[%s3 + $0x3d8] sm:$0xff]
  %v1962 = vld [vmem:[%s3 + $0x3e0] sm:$0xff]
  %v1963 = vld [vmem:[%s3 + $0x3e8] sm:$0xff]
  %v1964 = vld [vmem:[%s3 + $0x3f0] sm:$0xff]
  %v1965 = vld [vmem:[%s3 + $0x3f8] sm:$0xff]
  %v1966 = vld [vmem:[%s3 + $0x400] sm:$0xff]
  %v1967 = vld [vmem:[%s3 + $0x408] sm:$0xff]
  %v1968 = vld [vmem:[%s3 + $0x410] sm:$0xff]
  %v1969 = vld [vmem:[%s3 + $0x418] sm:$0xff]
  %v1970 = vld [vmem:[%s3 + $0x420] sm:$0xff]
  %v1971 = vld [vmem:[%s3 + $0x428] sm:$0xff]
  %v1972 = vld [vmem:[%s3 + $0x430] sm:$0xff]
  %v1973 = vld [vmem:[%s3 + $0x438] sm:$0xff]
  %v1974 = vld [vmem:[%s3 + $0x440] sm:$0xff]
  %v1975 = vld [vmem:[%s3 + $0x448] sm:$0xff]
  %v1976 = vld [vmem:[%s3 + $0x450] sm:$0xff]
  %v1977 = vld [vmem:[%s3 + $0x458] sm:$0xff]
  %v1978 = vld [vmem:[%s3 + $0x460] sm:$0xff]
  %v1979 = vld [vmem:[%s3 + $0x468] sm:$0xff]
  %v1980 = vld [vmem:[%s3 + $0x470] sm:$0xff]
  %v1981 = vld [vmem:[%s3 + $0x478] sm:$0xff]
  %v1982 = vld [vmem:[%s3 + $0x480] sm:$0xff]
  %v1983 = vld [vmem:[%s3 + $0x488] sm:$0xff]
  %v1984 = vld [vmem:[%s3 + $0x490] sm:$0xff]
  %v1985 = vld [vmem:[%s3 + $0x498] sm:$0xff]
  %v1986 = vld [vmem:[%s3 + $0x4a0] sm:$0xff]
  %v1987 = vld [vmem:[%s3 + $0x4a8] sm:$0xff]
  %v1988 = vld [vmem:[%s3 + $0x4b0] sm:$0xff]
  %v1989 = vld [vmem:[%s3 + $0x4b8] sm:$0xff]
  %v1990 = vld [vmem:[%s3 + $0x4c0] sm:$0xff]
  %v1991 = vld [vmem:[%s3 + $0x4c8] sm:$0xff]
  %v1992 = vld [vmem:[%s3 + $0x4d0] sm:$0xff]
  %v1993 = vld [vmem:[%s3 + $0x4d8] sm:$0xff]
  %v1994 = vld [vmem:[%s3 + $0x4e0] sm:$0xff]
  %v1995 = vld [vmem:[%s3 + $0x4e8] sm:$0xff]
  %v1996 = vld [vmem:[%s3 + $0x4f0] sm:$0xff]
  %v1997 = vld [vmem:[%s3 + $0x4f8] sm:$0xff]
  %v1998 = vld [vmem:[%s3 + $0x500] sm:$0xff]
  %v1999 = vld [vmem:[%s3 + $0x508] sm:$0xff]
  %v2000 = vld [vmem:[%s3 + $0x510] sm:$0xff]
  %v2001 = vld [vmem:[%s3 + $0x518] sm:$0xff]
  %v2002 = vld [vmem:[%s3 + $0x520] sm:$0xff]
  %v2003 = vld [vmem:[%s3 + $0x528] sm:$0xff]
  %v2004 = vld [vmem:[%s3 + $0x530] sm:$0xff]
  %v2005 = vld [vmem:[%s3 + $0x538] sm:$0xff]
  %v2006 = vld [vmem:[%s3 + $0x540] sm:$0xff]
  %v2007 = vld [vmem:[%s3 + $0x548] sm:$0xff]
  %v2008 = vld [vmem:[%s3 + $0x550] sm:$0xff]
  %v2009 = vld [vmem:[%s3 + $0x558] sm:$0xff]
  %v2010 = vld [vmem:[%s3 + $0x560] sm:$0xff]
  %v2011 = vld [vmem:[%s3 + $0x568] sm:$0xff]
  %2013 = vset.pattern.permute.xlu0 0
  %2014 = vperm.xlu0 %2013, %v1502
  %v2015 = vpop.permute.xlu0 %2014
  %2018 = vset.pattern.permute.xlu0 0
  %2019 = vperm.xlu0 %2018, %v1503
  %v2020 = vpop.permute.xlu0 %2019
  %2023 = vset.pattern.permute.xlu0 0
  %2024 = vperm.xlu0 %2023, %v1504
  %v2025 = vpop.permute.xlu0 %2024
  %2028 = vset.pattern.permute.xlu0 0
  %2029 = vperm.xlu0 %2028, %v1505
  %v2030 = vpop.permute.xlu0 %2029
  %2033 = vset.pattern.permute.xlu0 0
  %2034 = vperm.xlu0 %2033, %v1506
  %v2035 = vpop.permute.xlu0 %2034
  %2038 = vset.pattern.permute.xlu0 0
  %2039 = vperm.xlu0 %2038, %v1507
  %v2040 = vpop.permute.xlu0 %2039
  %2043 = vset.pattern.permute.xlu0 0
  %2044 = vperm.xlu0 %2043, %v1508
  %v2045 = vpop.permute.xlu0 %2044
  %2048 = vset.pattern.permute.xlu0 0
  %2049 = vperm.xlu0 %2048, %v1509
  %v2050 = vpop.permute.xlu0 %2049
  %2053 = vset.pattern.permute.xlu0 0
  %2054 = vperm.xlu0 %2053, %v1510
  %v2055 = vpop.permute.xlu0 %2054
  %2058 = vset.pattern.permute.xlu0 0
  %2059 = vperm.xlu0 %2058, %v1511
  %v2060 = vpop.permute.xlu0 %2059
  %2063 = vset.pattern.permute.xlu0 0
  %2064 = vperm.xlu0 %2063, %v1512
  %v2065 = vpop.permute.xlu0 %2064
  %2068 = vset.pattern.permute.xlu0 0
  %2069 = vperm.xlu0 %2068, %v1513
  %v2070 = vpop.permute.xlu0 %2069
  %2073 = vset.pattern.permute.xlu0 0
  %2074 = vperm.xlu0 %2073, %v1514
  %v2075 = vpop.permute.xlu0 %2074
  %2078 = vset.pattern.permute.xlu0 0
  %2079 = vperm.xlu0 %2078, %v1515
  %v2080 = vpop.permute.xlu0 %2079
  %2083 = vset.pattern.permute.xlu0 0
  %2084 = vperm.xlu0 %2083, %v1516
  %v2085 = vpop.permute.xlu0 %2084
  %2088 = vset.pattern.permute.xlu0 0
  %2089 = vperm.xlu0 %2088, %v1517
  %v2090 = vpop.permute.xlu0 %2089
  %2093 = vset.pattern.permute.xlu0 0
  %2094 = vperm.xlu0 %2093, %v1534
  %v2095 = vpop.permute.xlu0 %2094
  %2098 = vset.pattern.permute.xlu0 0
  %2099 = vperm.xlu0 %2098, %v1535
  %v2100 = vpop.permute.xlu0 %2099
  %2103 = vset.pattern.permute.xlu0 0
  %2104 = vperm.xlu0 %2103, %v1536
  %v2105 = vpop.permute.xlu0 %2104
  %2108 = vset.pattern.permute.xlu0 0
  %2109 = vperm.xlu0 %2108, %v1537
  %v2110 = vpop.permute.xlu0 %2109
  %2113 = vset.pattern.permute.xlu0 0
  %2114 = vperm.xlu0 %2113, %v1538
  %v2115 = vpop.permute.xlu0 %2114
  %2118 = vset.pattern.permute.xlu0 0
  %2119 = vperm.xlu0 %2118, %v1539
  %v2120 = vpop.permute.xlu0 %2119
  %2123 = vset.pattern.permute.xlu0 0
  %2124 = vperm.xlu0 %2123, %v1540
  %v2125 = vpop.permute.xlu0 %2124
  %2128 = vset.pattern.permute.xlu0 0
  %2129 = vperm.xlu0 %2128, %v1541
  %v2130 = vpop.permute.xlu0 %2129
  %2133 = vset.pattern.permute.xlu0 0
  %2134 = vperm.xlu0 %2133, %v1542
  %v2135 = vpop.permute.xlu0 %2134
  %2138 = vset.pattern.permute.xlu0 0
  %2139 = vperm.xlu0 %2138, %v1543
  %v2140 = vpop.permute.xlu0 %2139
  %2143 = vset.pattern.permute.xlu0 0
  %2144 = vperm.xlu0 %2143, %v1544
  %v2145 = vpop.permute.xlu0 %2144
  %2148 = vset.pattern.permute.xlu0 0
  %2149 = vperm.xlu0 %2148, %v1545
  %v2150 = vpop.permute.xlu0 %2149
  %2153 = vset.pattern.permute.xlu0 0
  %2154 = vperm.xlu0 %2153, %v1546
  %v2155 = vpop.permute.xlu0 %2154
  %2158 = vset.pattern.permute.xlu0 0
  %2159 = vperm.xlu0 %2158, %v1547
  %v2160 = vpop.permute.xlu0 %2159
  %2163 = vset.pattern.permute.xlu0 0
  %2164 = vperm.xlu0 %2163, %v1548
  %v2165 = vpop.permute.xlu0 %2164
  %2168 = vset.pattern.permute.xlu0 0
  %2169 = vperm.xlu0 %2168, %v1549
  %v2170 = vpop.permute.xlu0 %2169
  %2173 = vset.pattern.permute.xlu0 0
  %2174 = vperm.xlu0 %2173, %v1566
  %v2175 = vpop.permute.xlu0 %2174
  %2178 = vset.pattern.permute.xlu0 0
  %2179 = vperm.xlu0 %2178, %v1567
  %v2180 = vpop.permute.xlu0 %2179
  %2183 = vset.pattern.permute.xlu0 0
  %2184 = vperm.xlu0 %2183, %v1568
  %v2185 = vpop.permute.xlu0 %2184
  %2188 = vset.pattern.permute.xlu0 0
  %2189 = vperm.xlu0 %2188, %v1569
  %v2190 = vpop.permute.xlu0 %2189
  %2193 = vset.pattern.permute.xlu0 0
  %2194 = vperm.xlu0 %2193, %v1570
  %v2195 = vpop.permute.xlu0 %2194
  %2198 = vset.pattern.permute.xlu0 0
  %2199 = vperm.xlu0 %2198, %v1571
  %v2200 = vpop.permute.xlu0 %2199
  %2203 = vset.pattern.permute.xlu0 0
  %2204 = vperm.xlu0 %2203, %v1572
  %v2205 = vpop.permute.xlu0 %2204
  %2208 = vset.pattern.permute.xlu0 0
  %2209 = vperm.xlu0 %2208, %v1573
  %v2210 = vpop.permute.xlu0 %2209
  %2213 = vset.pattern.permute.xlu0 0
  %2214 = vperm.xlu0 %2213, %v1574
  %v2215 = vpop.permute.xlu0 %2214
  %2218 = vset.pattern.permute.xlu0 0
  %2219 = vperm.xlu0 %2218, %v1575
  %v2220 = vpop.permute.xlu0 %2219
  %2223 = vset.pattern.permute.xlu0 0
  %2224 = vperm.xlu0 %2223, %v1576
  %v2225 = vpop.permute.xlu0 %2224
  %2228 = vset.pattern.permute.xlu0 0
  %2229 = vperm.xlu0 %2228, %v1577
  %v2230 = vpop.permute.xlu0 %2229
  %2233 = vset.pattern.permute.xlu0 0
  %2234 = vperm.xlu0 %2233, %v1578
  %v2235 = vpop.permute.xlu0 %2234
  %2238 = vset.pattern.permute.xlu0 0
  %2239 = vperm.xlu0 %2238, %v1579
  %v2240 = vpop.permute.xlu0 %2239
  %2243 = vset.pattern.permute.xlu0 0
  %2244 = vperm.xlu0 %2243, %v1580
  %v2245 = vpop.permute.xlu0 %2244
  %2248 = vset.pattern.permute.xlu0 0
  %2249 = vperm.xlu0 %2248, %v1581
  %v2250 = vpop.permute.xlu0 %2249
  %2253 = vset.pattern.permute.xlu0 0
  %2254 = vperm.xlu0 %2253, %v1598
  %v2255 = vpop.permute.xlu0 %2254
  %2258 = vset.pattern.permute.xlu0 0
  %2259 = vperm.xlu0 %2258, %v1599
  %v2260 = vpop.permute.xlu0 %2259
  %2263 = vset.pattern.permute.xlu0 0
  %2264 = vperm.xlu0 %2263, %v1600
  %v2265 = vpop.permute.xlu0 %2264
  %2268 = vset.pattern.permute.xlu0 0
  %2269 = vperm.xlu0 %2268, %v1601
  %v2270 = vpop.permute.xlu0 %2269
  %2273 = vset.pattern.permute.xlu0 0
  %2274 = vperm.xlu0 %2273, %v1602
  %v2275 = vpop.permute.xlu0 %2274
  %2278 = vset.pattern.permute.xlu0 0
  %2279 = vperm.xlu0 %2278, %v1603
  %v2280 = vpop.permute.xlu0 %2279
  %2283 = vset.pattern.permute.xlu0 0
  %2284 = vperm.xlu0 %2283, %v1604
  %v2285 = vpop.permute.xlu0 %2284
  %2288 = vset.pattern.permute.xlu0 0
  %2289 = vperm.xlu0 %2288, %v1605
  %v2290 = vpop.permute.xlu0 %2289
  %2293 = vset.pattern.permute.xlu0 0
  %2294 = vperm.xlu0 %2293, %v1606
  %v2295 = vpop.permute.xlu0 %2294
  %2298 = vset.pattern.permute.xlu0 0
  %2299 = vperm.xlu0 %2298, %v1607
  %v2300 = vpop.permute.xlu0 %2299
  %2303 = vset.pattern.permute.xlu0 0
  %2304 = vperm.xlu0 %2303, %v1608
  %v2305 = vpop.permute.xlu0 %2304
  %2308 = vset.pattern.permute.xlu0 0
  %2309 = vperm.xlu0 %2308, %v1609
  %v2310 = vpop.permute.xlu0 %2309
  %2313 = vset.pattern.permute.xlu0 0
  %2314 = vperm.xlu0 %2313, %v1610
  %v2315 = vpop.permute.xlu0 %2314
  %2318 = vset.pattern.permute.xlu0 0
  %2319 = vperm.xlu0 %2318, %v1611
  %v2320 = vpop.permute.xlu0 %2319
  %2323 = vset.pattern.permute.xlu0 0
  %2324 = vperm.xlu0 %2323, %v1612
  %v2325 = vpop.permute.xlu0 %2324
  %2328 = vset.pattern.permute.xlu0 0
  %2329 = vperm.xlu0 %2328, %v1613
  %v2330 = vpop.permute.xlu0 %2329
  %2333 = vset.pattern.permute.xlu0 0
  %2334 = vperm.xlu0 %2333, %v1630
  %v2335 = vpop.permute.xlu0 %2334
  %2338 = vset.pattern.permute.xlu0 0
  %2339 = vperm.xlu0 %2338, %v1631
  %v2340 = vpop.permute.xlu0 %2339
  %2343 = vset.pattern.permute.xlu0 0
  %2344 = vperm.xlu0 %2343, %v1632
  %v2345 = vpop.permute.xlu0 %2344
  %2348 = vset.pattern.permute.xlu0 0
  %2349 = vperm.xlu0 %2348, %v1633
  %v2350 = vpop.permute.xlu0 %2349
  %2353 = vset.pattern.permute.xlu0 0
  %2354 = vperm.xlu0 %2353, %v1634
  %v2355 = vpop.permute.xlu0 %2354
  %2358 = vset.pattern.permute.xlu0 0
  %2359 = vperm.xlu0 %2358, %v1635
  %v2360 = vpop.permute.xlu0 %2359
  %2363 = vset.pattern.permute.xlu0 0
  %2364 = vperm.xlu0 %2363, %v1636
  %v2365 = vpop.permute.xlu0 %2364
  %2368 = vset.pattern.permute.xlu0 0
  %2369 = vperm.xlu0 %2368, %v1637
  %v2370 = vpop.permute.xlu0 %2369
  %2373 = vset.pattern.permute.xlu0 0
  %2374 = vperm.xlu0 %2373, %v1638
  %v2375 = vpop.permute.xlu0 %2374
  %2378 = vset.pattern.permute.xlu0 0
  %2379 = vperm.xlu0 %2378, %v1639
  %v2380 = vpop.permute.xlu0 %2379
  %2383 = vset.pattern.permute.xlu0 0
  %2384 = vperm.xlu0 %2383, %v1640
  %v2385 = vpop.permute.xlu0 %2384
  %2388 = vset.pattern.permute.xlu0 0
  %2389 = vperm.xlu0 %2388, %v1641
  %v2390 = vpop.permute.xlu0 %2389
  %2393 = vset.pattern.permute.xlu0 0
  %2394 = vperm.xlu0 %2393, %v1642
  %v2395 = vpop.permute.xlu0 %2394
  %2398 = vset.pattern.permute.xlu0 0
  %2399 = vperm.xlu0 %2398, %v1643
  %v2400 = vpop.permute.xlu0 %2399
  %2403 = vset.pattern.permute.xlu0 0
  %2404 = vperm.xlu0 %2403, %v1644
  %v2405 = vpop.permute.xlu0 %2404
  %2408 = vset.pattern.permute.xlu0 0
  %2409 = vperm.xlu0 %2408, %v1645
  %v2410 = vpop.permute.xlu0 %2409
  %2413 = vset.pattern.permute.xlu0 0
  %2414 = vperm.xlu0 %2413, %v1662
  %v2415 = vpop.permute.xlu0 %2414
  %2418 = vset.pattern.permute.xlu0 0
  %2419 = vperm.xlu0 %2418, %v1663
  %v2420 = vpop.permute.xlu0 %2419
  %2423 = vset.pattern.permute.xlu0 0
  %2424 = vperm.xlu0 %2423, %v1664
  %v2425 = vpop.permute.xlu0 %2424
  %2428 = vset.pattern.permute.xlu0 0
  %2429 = vperm.xlu0 %2428, %v1665
  %v2430 = vpop.permute.xlu0 %2429
  %2433 = vset.pattern.permute.xlu0 0
  %2434 = vperm.xlu0 %2433, %v1666
  %v2435 = vpop.permute.xlu0 %2434
  %2438 = vset.pattern.permute.xlu0 0
  %2439 = vperm.xlu0 %2438, %v1667
  %v2440 = vpop.permute.xlu0 %2439
  %2443 = vset.pattern.permute.xlu0 0
  %2444 = vperm.xlu0 %2443, %v1668
  %v2445 = vpop.permute.xlu0 %2444
  %2448 = vset.pattern.permute.xlu0 0
  %2449 = vperm.xlu0 %2448, %v1669
  %v2450 = vpop.permute.xlu0 %2449
  %2453 = vset.pattern.permute.xlu0 0
  %2454 = vperm.xlu0 %2453, %v1670
  %v2455 = vpop.permute.xlu0 %2454
  %2458 = vset.pattern.permute.xlu0 0
  %2459 = vperm.xlu0 %2458, %v1671
  %v2460 = vpop.permute.xlu0 %2459
  %2463 = vset.pattern.permute.xlu0 0
  %2464 = vperm.xlu0 %2463, %v1672
  %v2465 = vpop.permute.xlu0 %2464
  %2468 = vset.pattern.permute.xlu0 0
  %2469 = vperm.xlu0 %2468, %v1673
  %v2470 = vpop.permute.xlu0 %2469
  %2473 = vset.pattern.permute.xlu0 0
  %2474 = vperm.xlu0 %2473, %v1674
  %v2475 = vpop.permute.xlu0 %2474
  %2478 = vset.pattern.permute.xlu0 0
  %2479 = vperm.xlu0 %2478, %v1675
  %v2480 = vpop.permute.xlu0 %2479
  %2483 = vset.pattern.permute.xlu0 0
  %2484 = vperm.xlu0 %2483, %v1676
  %v2485 = vpop.permute.xlu0 %2484
  %2488 = vset.pattern.permute.xlu0 0
  %2489 = vperm.xlu0 %2488, %v1677
  %v2490 = vpop.permute.xlu0 %2489
  %2493 = vset.pattern.permute.xlu0 0
  %2494 = vperm.xlu0 %2493, %v1694
  %v2495 = vpop.permute.xlu0 %2494
  %2498 = vset.pattern.permute.xlu0 0
  %2499 = vperm.xlu0 %2498, %v1695
  %v2500 = vpop.permute.xlu0 %2499
  %2503 = vset.pattern.permute.xlu0 0
  %2504 = vperm.xlu0 %2503, %v1696
  %v2505 = vpop.permute.xlu0 %2504
  %2508 = vset.pattern.permute.xlu0 0
  %2509 = vperm.xlu0 %2508, %v1697
  %v2510 = vpop.permute.xlu0 %2509
  %2513 = vset.pattern.permute.xlu0 0
  %2514 = vperm.xlu0 %2513, %v1698
  %v2515 = vpop.permute.xlu0 %2514
  %2518 = vset.pattern.permute.xlu0 0
  %2519 = vperm.xlu0 %2518, %v1699
  %v2520 = vpop.permute.xlu0 %2519
  %2523 = vset.pattern.permute.xlu0 0
  %2524 = vperm.xlu0 %2523, %v1700
  %v2525 = vpop.permute.xlu0 %2524
  %2528 = vset.pattern.permute.xlu0 0
  %2529 = vperm.xlu0 %2528, %v1701
  %v2530 = vpop.permute.xlu0 %2529
  %2533 = vset.pattern.permute.xlu0 0
  %2534 = vperm.xlu0 %2533, %v1702
  %v2535 = vpop.permute.xlu0 %2534
  %2538 = vset.pattern.permute.xlu0 0
  %2539 = vperm.xlu0 %2538, %v1703
  %v2540 = vpop.permute.xlu0 %2539
  %2543 = vset.pattern.permute.xlu0 0
  %2544 = vperm.xlu0 %2543, %v1704
  %v2545 = vpop.permute.xlu0 %2544
  %2548 = vset.pattern.permute.xlu0 0
  %2549 = vperm.xlu0 %2548, %v1705
  %v2550 = vpop.permute.xlu0 %2549
  %2553 = vset.pattern.permute.xlu0 0
  %2554 = vperm.xlu0 %2553, %v1706
  %v2555 = vpop.permute.xlu0 %2554
  %2558 = vset.pattern.permute.xlu0 0
  %2559 = vperm.xlu0 %2558, %v1707
  %v2560 = vpop.permute.xlu0 %2559
  %2563 = vset.pattern.permute.xlu0 0
  %2564 = vperm.xlu0 %2563, %v1708
  %v2565 = vpop.permute.xlu0 %2564
  %2568 = vset.pattern.permute.xlu0 0
  %2569 = vperm.xlu0 %2568, %v1709
  %v2570 = vpop.permute.xlu0 %2569
  %2573 = vset.pattern.permute.xlu0 0
  %2574 = vperm.xlu0 %2573, %v1726
  %v2575 = vpop.permute.xlu0 %2574
  %2578 = vset.pattern.permute.xlu0 0
  %2579 = vperm.xlu0 %2578, %v1727
  %v2580 = vpop.permute.xlu0 %2579
  %2583 = vset.pattern.permute.xlu0 0
  %2584 = vperm.xlu0 %2583, %v1728
  %v2585 = vpop.permute.xlu0 %2584
  %2588 = vset.pattern.permute.xlu0 0
  %2589 = vperm.xlu0 %2588, %v1729
  %v2590 = vpop.permute.xlu0 %2589
  %2593 = vset.pattern.permute.xlu0 0
  %2594 = vperm.xlu0 %2593, %v1730
  %v2595 = vpop.permute.xlu0 %2594
  %2598 = vset.pattern.permute.xlu0 0
  %2599 = vperm.xlu0 %2598, %v1731
  %v2600 = vpop.permute.xlu0 %2599
  %2603 = vset.pattern.permute.xlu0 0
  %2604 = vperm.xlu0 %2603, %v1732
  %v2605 = vpop.permute.xlu0 %2604
  %2608 = vset.pattern.permute.xlu0 0
  %2609 = vperm.xlu0 %2608, %v1733
  %v2610 = vpop.permute.xlu0 %2609
  %2613 = vset.pattern.permute.xlu0 0
  %2614 = vperm.xlu0 %2613, %v1734
  %v2615 = vpop.permute.xlu0 %2614
  %2618 = vset.pattern.permute.xlu0 0
  %2619 = vperm.xlu0 %2618, %v1735
  %v2620 = vpop.permute.xlu0 %2619
  %2623 = vset.pattern.permute.xlu0 0
  %2624 = vperm.xlu0 %2623, %v1736
  %v2625 = vpop.permute.xlu0 %2624
  %2628 = vset.pattern.permute.xlu0 0
  %2629 = vperm.xlu0 %2628, %v1737
  %v2630 = vpop.permute.xlu0 %2629
  %2633 = vset.pattern.permute.xlu0 0
  %2634 = vperm.xlu0 %2633, %v1738
  %v2635 = vpop.permute.xlu0 %2634
  %2638 = vset.pattern.permute.xlu0 0
  %2639 = vperm.xlu0 %2638, %v1739
  %v2640 = vpop.permute.xlu0 %2639
  %2643 = vset.pattern.permute.xlu0 0
  %2644 = vperm.xlu0 %2643, %v1740
  %v2645 = vpop.permute.xlu0 %2644
  %2648 = vset.pattern.permute.xlu0 0
  %2649 = vperm.xlu0 %2648, %v1741
  %v2650 = vpop.permute.xlu0 %2649
  %2653 = vset.pattern.permute.xlu0 0
  %2654 = vperm.xlu0 %2653, %v1758
  %v2655 = vpop.permute.xlu0 %2654
  %2658 = vset.pattern.permute.xlu0 0
  %2659 = vperm.xlu0 %2658, %v1759
  %v2660 = vpop.permute.xlu0 %2659
  %2663 = vset.pattern.permute.xlu0 0
  %2664 = vperm.xlu0 %2663, %v1760
  %v2665 = vpop.permute.xlu0 %2664
  %2668 = vset.pattern.permute.xlu0 0
  %2669 = vperm.xlu0 %2668, %v1761
  %v2670 = vpop.permute.xlu0 %2669
  %2673 = vset.pattern.permute.xlu0 0
  %2674 = vperm.xlu0 %2673, %v1762
  %v2675 = vpop.permute.xlu0 %2674
  %2678 = vset.pattern.permute.xlu0 0
  %2679 = vperm.xlu0 %2678, %v1763
  %v2680 = vpop.permute.xlu0 %2679
  %2683 = vset.pattern.permute.xlu0 0
  %2684 = vperm.xlu0 %2683, %v1764
  %v2685 = vpop.permute.xlu0 %2684
  %2688 = vset.pattern.permute.xlu0 0
  %2689 = vperm.xlu0 %2688, %v1765
  %v2690 = vpop.permute.xlu0 %2689
  %2693 = vset.pattern.permute.xlu0 0
  %2694 = vperm.xlu0 %2693, %v1766
  %v2695 = vpop.permute.xlu0 %2694
  %2698 = vset.pattern.permute.xlu0 0
  %2699 = vperm.xlu0 %2698, %v1767
  %v2700 = vpop.permute.xlu0 %2699
  %2703 = vset.pattern.permute.xlu0 0
  %2704 = vperm.xlu0 %2703, %v1768
  %v2705 = vpop.permute.xlu0 %2704
  %2708 = vset.pattern.permute.xlu0 0
  %2709 = vperm.xlu0 %2708, %v1769
  %v2710 = vpop.permute.xlu0 %2709
  %2713 = vset.pattern.permute.xlu0 0
  %2714 = vperm.xlu0 %2713, %v1770
  %v2715 = vpop.permute.xlu0 %2714
  %2718 = vset.pattern.permute.xlu0 0
  %2719 = vperm.xlu0 %2718, %v1771
  %v2720 = vpop.permute.xlu0 %2719
  %2723 = vset.pattern.permute.xlu0 0
  %2724 = vperm.xlu0 %2723, %v1772
  %v2725 = vpop.permute.xlu0 %2724
  %2728 = vset.pattern.permute.xlu0 0
  %2729 = vperm.xlu0 %2728, %v1773
  %v2730 = vpop.permute.xlu0 %2729
  %2733 = vset.pattern.permute.xlu0 0
  %2734 = vperm.xlu0 %2733, %v1790
  %v2735 = vpop.permute.xlu0 %2734
  %2738 = vset.pattern.permute.xlu0 0
  %2739 = vperm.xlu0 %2738, %v1791
  %v2740 = vpop.permute.xlu0 %2739
  %2743 = vset.pattern.permute.xlu0 0
  %2744 = vperm.xlu0 %2743, %v1792
  %v2745 = vpop.permute.xlu0 %2744
  %2748 = vset.pattern.permute.xlu0 0
  %2749 = vperm.xlu0 %2748, %v1793
  %v2750 = vpop.permute.xlu0 %2749
  %2753 = vset.pattern.permute.xlu0 0
  %2754 = vperm.xlu0 %2753, %v1794
  %v2755 = vpop.permute.xlu0 %2754
  %2758 = vset.pattern.permute.xlu0 0
  %2759 = vperm.xlu0 %2758, %v1795
  %v2760 = vpop.permute.xlu0 %2759
  %2763 = vset.pattern.permute.xlu0 0
  %2764 = vperm.xlu0 %2763, %v1796
  %v2765 = vpop.permute.xlu0 %2764
  %2768 = vset.pattern.permute.xlu0 0
  %2769 = vperm.xlu0 %2768, %v1797
  %v2770 = vpop.permute.xlu0 %2769
  %2773 = vset.pattern.permute.xlu0 0
  %2774 = vperm.xlu0 %2773, %v1798
  %v2775 = vpop.permute.xlu0 %2774
  %2778 = vset.pattern.permute.xlu0 0
  %2779 = vperm.xlu0 %2778, %v1799
  %v2780 = vpop.permute.xlu0 %2779
  %2783 = vset.pattern.permute.xlu0 0
  %2784 = vperm.xlu0 %2783, %v1800
  %v2785 = vpop.permute.xlu0 %2784
  %2788 = vset.pattern.permute.xlu0 0
  %2789 = vperm.xlu0 %2788, %v1801
  %v2790 = vpop.permute.xlu0 %2789
  %2793 = vset.pattern.permute.xlu0 0
  %2794 = vperm.xlu0 %2793, %v1802
  %v2795 = vpop.permute.xlu0 %2794
  %2798 = vset.pattern.permute.xlu0 0
  %2799 = vperm.xlu0 %2798, %v1803
  %v2800 = vpop.permute.xlu0 %2799
  %2803 = vset.pattern.permute.xlu0 0
  %2804 = vperm.xlu0 %2803, %v1804
  %v2805 = vpop.permute.xlu0 %2804
  %2808 = vset.pattern.permute.xlu0 0
  %2809 = vperm.xlu0 %2808, %v1805
  %v2810 = vpop.permute.xlu0 %2809
  %2813 = vset.pattern.permute.xlu0 0
  %2814 = vperm.xlu0 %2813, %v1822
  %v2815 = vpop.permute.xlu0 %2814
  %2818 = vset.pattern.permute.xlu0 0
  %2819 = vperm.xlu0 %2818, %v1823
  %v2820 = vpop.permute.xlu0 %2819
  %2823 = vset.pattern.permute.xlu0 0
  %2824 = vperm.xlu0 %2823, %v1824
  %v2825 = vpop.permute.xlu0 %2824
  %2828 = vset.pattern.permute.xlu0 0
  %2829 = vperm.xlu0 %2828, %v1825
  %v2830 = vpop.permute.xlu0 %2829
  %2833 = vset.pattern.permute.xlu0 0
  %2834 = vperm.xlu0 %2833, %v1826
  %v2835 = vpop.permute.xlu0 %2834
  %2838 = vset.pattern.permute.xlu0 0
  %2839 = vperm.xlu0 %2838, %v1827
  %v2840 = vpop.permute.xlu0 %2839
  %2843 = vset.pattern.permute.xlu0 0
  %2844 = vperm.xlu0 %2843, %v1828
  %v2845 = vpop.permute.xlu0 %2844
  %2848 = vset.pattern.permute.xlu0 0
  %2849 = vperm.xlu0 %2848, %v1829
  %v2850 = vpop.permute.xlu0 %2849
  %2853 = vset.pattern.permute.xlu0 0
  %2854 = vperm.xlu0 %2853, %v1830
  %v2855 = vpop.permute.xlu0 %2854
  %2858 = vset.pattern.permute.xlu0 0
  %2859 = vperm.xlu0 %2858, %v1831
  %v2860 = vpop.permute.xlu0 %2859
  %2863 = vset.pattern.permute.xlu0 0
  %2864 = vperm.xlu0 %2863, %v1832
  %v2865 = vpop.permute.xlu0 %2864
  %2868 = vset.pattern.permute.xlu0 0
  %2869 = vperm.xlu0 %2868, %v1833
  %v2870 = vpop.permute.xlu0 %2869
  %2873 = vset.pattern.permute.xlu0 0
  %2874 = vperm.xlu0 %2873, %v1834
  %v2875 = vpop.permute.xlu0 %2874
  %2878 = vset.pattern.permute.xlu0 0
  %2879 = vperm.xlu0 %2878, %v1835
  %v2880 = vpop.permute.xlu0 %2879
  %v2882 = vmul.f32 %v2015, %v1838
  %v2883 = vmul.f32 %v2020, %v1839
  %v2884 = vmul.f32 %v2025, %v1840
  %v2885 = vmul.f32 %v2030, %v1841
  %v2886 = vmul.f32 %v2035, %v1842
  %v2887 = vmul.f32 %v2040, %v1843
  %v2888 = vmul.f32 %v2045, %v1844
  %v2889 = vmul.f32 %v2050, %v1845
  %v2890 = vmul.f32 %v2055, %v1846
  %v2891 = vmul.f32 %v2060, %v1847
  %v2892 = vmul.f32 %v2065, %v1848
  %v2893 = vmul.f32 %v2070, %v1849
  %v2894 = vmul.f32 %v2075, %v1850
  %v2895 = vmul.f32 %v2080, %v1851
  %v2896 = vmul.f32 %v2085, %v1852
  %v2897 = vmul.f32 %v2090, %v1853
  %v2898 = vmul.f32 %v2095, %v1854
  %v2899 = vmul.f32 %v2100, %v1855
  %v2900 = vmul.f32 %v2105, %v1856
  %v2901 = vmul.f32 %v2110, %v1857
  %v2902 = vmul.f32 %v2115, %v1858
  %v2903 = vmul.f32 %v2120, %v1859
  %v2904 = vmul.f32 %v2125, %v1860
  %v2905 = vmul.f32 %v2130, %v1861
  %v2906 = vmul.f32 %v2135, %v1862
  %v2907 = vmul.f32 %v2140, %v1863
  %v2908 = vmul.f32 %v2145, %v1864
  %v2909 = vmul.f32 %v2150, %v1865
  %v2910 = vmul.f32 %v2155, %v1866
  %v2911 = vmul.f32 %v2160, %v1867
  %v2912 = vmul.f32 %v2165, %v1868
  %v2913 = vmul.f32 %v2170, %v1869
  %v2914 = vmul.f32 %v2175, %v1870
  %v2915 = vmul.f32 %v2180, %v1871
  %v2916 = vmul.f32 %v2185, %v1872
  %v2917 = vmul.f32 %v2190, %v1873
  %v2918 = vmul.f32 %v2195, %v1874
  %v2919 = vmul.f32 %v2200, %v1875
  %v2920 = vmul.f32 %v2205, %v1876
  %v2921 = vmul.f32 %v2210, %v1877
  %v2922 = vmul.f32 %v2215, %v1878
  %v2923 = vmul.f32 %v2220, %v1879
  %v2924 = vmul.f32 %v2225, %v1880
  %v2925 = vmul.f32 %v2230, %v1881
  %v2926 = vmul.f32 %v2235, %v1882
  %v2927 = vmul.f32 %v2240, %v1883
  %v2928 = vmul.f32 %v2245, %v1884
  %v2929 = vmul.f32 %v2250, %v1885
  %v2930 = vmul.f32 %v2255, %v1886
  %v2931 = vmul.f32 %v2260, %v1887
  %v2932 = vmul.f32 %v2265, %v1888
  %v2933 = vmul.f32 %v2270, %v1889
  %v2934 = vmul.f32 %v2275, %v1890
  %v2935 = vmul.f32 %v2280, %v1891
  %v2936 = vmul.f32 %v2285, %v1892
  %v2937 = vmul.f32 %v2290, %v1893
  %v2938 = vmul.f32 %v2295, %v1894
  %v2939 = vmul.f32 %v2300, %v1895
  %v2940 = vmul.f32 %v2305, %v1896
  %v2941 = vmul.f32 %v2310, %v1897
  %v2942 = vmul.f32 %v2315, %v1898
  %v2943 = vmul.f32 %v2320, %v1899
  %v2944 = vmul.f32 %v2325, %v1900
  %v2945 = vmul.f32 %v2330, %v1901
  %v2946 = vmul.f32 %v2335, %v1902
  %v2947 = vmul.f32 %v2340, %v1903
  %v2948 = vmul.f32 %v2345, %v1904
  %v2949 = vmul.f32 %v2350, %v1905
  %v2950 = vmul.f32 %v2355, %v1906
  %v2951 = vmul.f32 %v2360, %v1907
  %v2952 = vmul.f32 %v2365, %v1908
  %v2953 = vmul.f32 %v2370, %v1909
  %v2954 = vmul.f32 %v2375, %v1910
  %v2955 = vmul.f32 %v2380, %v1911
  %v2956 = vmul.f32 %v2385, %v1912
  %v2957 = vmul.f32 %v2390, %v1913
  %v2958 = vmul.f32 %v2395, %v1914
  %v2959 = vmul.f32 %v2400, %v1915
  %v2960 = vmul.f32 %v2405, %v1916
  %v2961 = vmul.f32 %v2410, %v1917
  %v2962 = vmul.f32 %v2415, %v1918
  %v2963 = vmul.f32 %v2420, %v1919
  %v2964 = vmul.f32 %v2425, %v1920
  %v2965 = vmul.f32 %v2430, %v1921
  %v2966 = vmul.f32 %v2435, %v1922
  %v2967 = vmul.f32 %v2440, %v1923
  %v2968 = vmul.f32 %v2445, %v1924
  %v2969 = vmul.f32 %v2450, %v1925
  %v2970 = vmul.f32 %v2455, %v1926
  %v2971 = vmul.f32 %v2460, %v1927
  %v2972 = vmul.f32 %v2465, %v1928
  %v2973 = vmul.f32 %v2470, %v1929
  %v2974 = vmul.f32 %v2475, %v1930
  %v2975 = vmul.f32 %v2480, %v1931
  %v2976 = vmul.f32 %v2485, %v1932
  %v2977 = vmul.f32 %v2490, %v1933
  %v2978 = vmul.f32 %v2495, %v1934
  %v2979 = vmul.f32 %v2500, %v1935
  %v2980 = vmul.f32 %v2505, %v1936
  %v2981 = vmul.f32 %v2510, %v1937
  %v2982 = vmul.f32 %v2515, %v1938
  %v2983 = vmul.f32 %v2520, %v1939
  %v2984 = vmul.f32 %v2525, %v1940
  %v2985 = vmul.f32 %v2530, %v1941
  %v2986 = vmul.f32 %v2535, %v1942
  %v2987 = vmul.f32 %v2540, %v1943
  %v2988 = vmul.f32 %v2545, %v1944
  %v2989 = vmul.f32 %v2550, %v1945
  %v2990 = vmul.f32 %v2555, %v1946
  %v2991 = vmul.f32 %v2560, %v1947
  %v2992 = vmul.f32 %v2565, %v1948
  %v2993 = vmul.f32 %v2570, %v1949
  %v2994 = vmul.f32 %v2575, %v1950
  %v2995 = vmul.f32 %v2580, %v1951
  %v2996 = vmul.f32 %v2585, %v1952
  %v2997 = vmul.f32 %v2590, %v1953
  %v2998 = vmul.f32 %v2595, %v1954
  %v2999 = vmul.f32 %v2600, %v1955
  %v3000 = vmul.f32 %v2605, %v1956
  %v3001 = vmul.f32 %v2610, %v1957
  %v3002 = vmul.f32 %v2615, %v1958
  %v3003 = vmul.f32 %v2620, %v1959
  %v3004 = vmul.f32 %v2625, %v1960
  %v3005 = vmul.f32 %v2630, %v1961
  %v3006 = vmul.f32 %v2635, %v1962
  %v3007 = vmul.f32 %v2640, %v1963
  %v3008 = vmul.f32 %v2645, %v1964
  %v3009 = vmul.f32 %v2650, %v1965
  %v3010 = vmul.f32 %v2655, %v1966
  %v3011 = vmul.f32 %v2660, %v1967
  %v3012 = vmul.f32 %v2665, %v1968
  %v3013 = vmul.f32 %v2670, %v1969
  %v3014 = vmul.f32 %v2675, %v1970
  %v3015 = vmul.f32 %v2680, %v1971
  %v3016 = vmul.f32 %v2685, %v1972
  %v3017 = vmul.f32 %v2690, %v1973
  %v3018 = vmul.f32 %v2695, %v1974
  %v3019 = vmul.f32 %v2700, %v1975
  %v3020 = vmul.f32 %v2705, %v1976
  %v3021 = vmul.f32 %v2710, %v1977
  %v3022 = vmul.f32 %v2715, %v1978
  %v3023 = vmul.f32 %v2720, %v1979
  %v3024 = vmul.f32 %v2725, %v1980
  %v3025 = vmul.f32 %v2730, %v1981
  %v3026 = vmul.f32 %v2735, %v1982
  %v3027 = vmul.f32 %v2740, %v1983
  %v3028 = vmul.f32 %v2745, %v1984
  %v3029 = vmul.f32 %v2750, %v1985
  %v3030 = vmul.f32 %v2755, %v1986
  %v3031 = vmul.f32 %v2760, %v1987
  %v3032 = vmul.f32 %v2765, %v1988
  %v3033 = vmul.f32 %v2770, %v1989
  %v3034 = vmul.f32 %v2775, %v1990
  %v3035 = vmul.f32 %v2780, %v1991
  %v3036 = vmul.f32 %v2785, %v1992
  %v3037 = vmul.f32 %v2790, %v1993
  %v3038 = vmul.f32 %v2795, %v1994
  %v3039 = vmul.f32 %v2800, %v1995
  %v3040 = vmul.f32 %v2805, %v1996
  %v3041 = vmul.f32 %v2810, %v1997
  %v3042 = vmul.f32 %v2815, %v1998
  %v3043 = vmul.f32 %v2820, %v1999
  %v3044 = vmul.f32 %v2825, %v2000
  %v3045 = vmul.f32 %v2830, %v2001
  %v3046 = vmul.f32 %v2835, %v2002
  %v3047 = vmul.f32 %v2840, %v2003
  %v3048 = vmul.f32 %v2845, %v2004
  %v3049 = vmul.f32 %v2850, %v2005
  %v3050 = vmul.f32 %v2855, %v2006
  %v3051 = vmul.f32 %v2860, %v2007
  %v3052 = vmul.f32 %v2865, %v2008
  %v3053 = vmul.f32 %v2870, %v2009
  %v3054 = vmul.f32 %v2875, %v2010
  %v3055 = vmul.f32 %v2880, %v2011
  %vm3056 = vcmask 400384
  %3057 = vst.msk [vmem:[%s4] sm:$0xff] %vm3056, %v2882
  %3058 = vst.msk [vmem:[%s4 + $0x8] sm:$0xff] %vm3056, %v2883
  %3059 = vst.msk [vmem:[%s4 + $0x10] sm:$0xff] %vm3056, %v2884
  %3060 = vst.msk [vmem:[%s4 + $0x18] sm:$0xff] %vm3056, %v2885
  %3061 = vst.msk [vmem:[%s4 + $0x20] sm:$0xff] %vm3056, %v2886
  %3062 = vst.msk [vmem:[%s4 + $0x28] sm:$0xff] %vm3056, %v2887
  %3063 = vst.msk [vmem:[%s4 + $0x30] sm:$0xff] %vm3056, %v2888
  %3064 = vst.msk [vmem:[%s4 + $0x38] sm:$0xff] %vm3056, %v2889
  %3065 = vst.msk [vmem:[%s4 + $0x40] sm:$0xff] %vm3056, %v2890
  %3066 = vst.msk [vmem:[%s4 + $0x48] sm:$0xff] %vm3056, %v2891
  %3067 = vst.msk [vmem:[%s4 + $0x50] sm:$0xff] %vm3056, %v2892
  %3068 = vst.msk [vmem:[%s4 + $0x58] sm:$0xff] %vm3056, %v2893
  %3069 = vst.msk [vmem:[%s4 + $0x60] sm:$0xff] %vm3056, %v2894
  %3070 = vst.msk [vmem:[%s4 + $0x68] sm:$0xff] %vm3056, %v2895
  %3071 = vst.msk [vmem:[%s4 + $0x70] sm:$0xff] %vm3056, %v2896
  %3072 = vst.msk [vmem:[%s4 + $0x78] sm:$0xff] %vm3056, %v2897
  %3073 = vst.msk [vmem:[%s4 + $0x80] sm:$0xff] %vm3056, %v2898
  %3074 = vst.msk [vmem:[%s4 + $0x88] sm:$0xff] %vm3056, %v2899
  %3075 = vst.msk [vmem:[%s4 + $0x90] sm:$0xff] %vm3056, %v2900
  %3076 = vst.msk [vmem:[%s4 + $0x98] sm:$0xff] %vm3056, %v2901
  %3077 = vst.msk [vmem:[%s4 + $0xa0] sm:$0xff] %vm3056, %v2902
  %3078 = vst.msk [vmem:[%s4 + $0xa8] sm:$0xff] %vm3056, %v2903
  %3079 = vst.msk [vmem:[%s4 + $0xb0] sm:$0xff] %vm3056, %v2904
  %3080 = vst.msk [vmem:[%s4 + $0xb8] sm:$0xff] %vm3056, %v2905
  %3081 = vst.msk [vmem:[%s4 + $0xc0] sm:$0xff] %vm3056, %v2906
  %3082 = vst.msk [vmem:[%s4 + $0xc8] sm:$0xff] %vm3056, %v2907
  %3083 = vst.msk [vmem:[%s4 + $0xd0] sm:$0xff] %vm3056, %v2908
  %3084 = vst.msk [vmem:[%s4 + $0xd8] sm:$0xff] %vm3056, %v2909
  %3085 = vst.msk [vmem:[%s4 + $0xe0] sm:$0xff] %vm3056, %v2910
  %3086 = vst.msk [vmem:[%s4 + $0xe8] sm:$0xff] %vm3056, %v2911
  %3087 = vst.msk [vmem:[%s4 + $0xf0] sm:$0xff] %vm3056, %v2912
  %3088 = vst.msk [vmem:[%s4 + $0xf8] sm:$0xff] %vm3056, %v2913
  %3089 = vst.msk [vmem:[%s4 + $0x100] sm:$0xff] %vm3056, %v2914
  %3090 = vst.msk [vmem:[%s4 + $0x108] sm:$0xff] %vm3056, %v2915
  %3091 = vst.msk [vmem:[%s4 + $0x110] sm:$0xff] %vm3056, %v2916
  %3092 = vst.msk [vmem:[%s4 + $0x118] sm:$0xff] %vm3056, %v2917
  %3093 = vst.msk [vmem:[%s4 + $0x120] sm:$0xff] %vm3056, %v2918
  %3094 = vst.msk [vmem:[%s4 + $0x128] sm:$0xff] %vm3056, %v2919
  %3095 = vst.msk [vmem:[%s4 + $0x130] sm:$0xff] %vm3056, %v2920
  %3096 = vst.msk [vmem:[%s4 + $0x138] sm:$0xff] %vm3056, %v2921
  %3097 = vst.msk [vmem:[%s4 + $0x140] sm:$0xff] %vm3056, %v2922
  %3098 = vst.msk [vmem:[%s4 + $0x148] sm:$0xff] %vm3056, %v2923
  %3099 = vst.msk [vmem:[%s4 + $0x150] sm:$0xff] %vm3056, %v2924
  %3100 = vst.msk [vmem:[%s4 + $0x158] sm:$0xff] %vm3056, %v2925
  %3101 = vst.msk [vmem:[%s4 + $0x160] sm:$0xff] %vm3056, %v2926
  %3102 = vst.msk [vmem:[%s4 + $0x168] sm:$0xff] %vm3056, %v2927
  %3103 = vst.msk [vmem:[%s4 + $0x170] sm:$0xff] %vm3056, %v2928
  %3104 = vst.msk [vmem:[%s4 + $0x178] sm:$0xff] %vm3056, %v2929
  %3105 = vst.msk [vmem:[%s4 + $0x180] sm:$0xff] %vm3056, %v2930
  %3106 = vst.msk [vmem:[%s4 + $0x188] sm:$0xff] %vm3056, %v2931
  %3107 = vst.msk [vmem:[%s4 + $0x190] sm:$0xff] %vm3056, %v2932
  %3108 = vst.msk [vmem:[%s4 + $0x198] sm:$0xff] %vm3056, %v2933
  %3109 = vst.msk [vmem:[%s4 + $0x1a0] sm:$0xff] %vm3056, %v2934
  %3110 = vst.msk [vmem:[%s4 + $0x1a8] sm:$0xff] %vm3056, %v2935
  %3111 = vst.msk [vmem:[%s4 + $0x1b0] sm:$0xff] %vm3056, %v2936
  %3112 = vst.msk [vmem:[%s4 + $0x1b8] sm:$0xff] %vm3056, %v2937
  %3113 = vst.msk [vmem:[%s4 + $0x1c0] sm:$0xff] %vm3056, %v2938
  %3114 = vst.msk [vmem:[%s4 + $0x1c8] sm:$0xff] %vm3056, %v2939
  %3115 = vst.msk [vmem:[%s4 + $0x1d0] sm:$0xff] %vm3056, %v2940
  %3116 = vst.msk [vmem:[%s4 + $0x1d8] sm:$0xff] %vm3056, %v2941
  %3117 = vst.msk [vmem:[%s4 + $0x1e0] sm:$0xff] %vm3056, %v2942
  %3118 = vst.msk [vmem:[%s4 + $0x1e8] sm:$0xff] %vm3056, %v2943
  %3119 = vst.msk [vmem:[%s4 + $0x1f0] sm:$0xff] %vm3056, %v2944
  %3120 = vst.msk [vmem:[%s4 + $0x1f8] sm:$0xff] %vm3056, %v2945
  %3121 = vst.msk [vmem:[%s4 + $0x200] sm:$0xff] %vm3056, %v2946
  %3122 = vst.msk [vmem:[%s4 + $0x208] sm:$0xff] %vm3056, %v2947
  %3123 = vst.msk [vmem:[%s4 + $0x210] sm:$0xff] %vm3056, %v2948
  %3124 = vst.msk [vmem:[%s4 + $0x218] sm:$0xff] %vm3056, %v2949
  %3125 = vst.msk [vmem:[%s4 + $0x220] sm:$0xff] %vm3056, %v2950
  %3126 = vst.msk [vmem:[%s4 + $0x228] sm:$0xff] %vm3056, %v2951
  %3127 = vst.msk [vmem:[%s4 + $0x230] sm:$0xff] %vm3056, %v2952
  %3128 = vst.msk [vmem:[%s4 + $0x238] sm:$0xff] %vm3056, %v2953
  %3129 = vst.msk [vmem:[%s4 + $0x240] sm:$0xff] %vm3056, %v2954
  %3130 = vst.msk [vmem:[%s4 + $0x248] sm:$0xff] %vm3056, %v2955
  %3131 = vst.msk [vmem:[%s4 + $0x250] sm:$0xff] %vm3056, %v2956
  %3132 = vst.msk [vmem:[%s4 + $0x258] sm:$0xff] %vm3056, %v2957
  %3133 = vst.msk [vmem:[%s4 + $0x260] sm:$0xff] %vm3056, %v2958
  %3134 = vst.msk [vmem:[%s4 + $0x268] sm:$0xff] %vm3056, %v2959
  %3135 = vst.msk [vmem:[%s4 + $0x270] sm:$0xff] %vm3056, %v2960
  %3136 = vst.msk [vmem:[%s4 + $0x278] sm:$0xff] %vm3056, %v2961
  %3137 = vst.msk [vmem:[%s4 + $0x280] sm:$0xff] %vm3056, %v2962
  %3138 = vst.msk [vmem:[%s4 + $0x288] sm:$0xff] %vm3056, %v2963
  %3139 = vst.msk [vmem:[%s4 + $0x290] sm:$0xff] %vm3056, %v2964
  %3140 = vst.msk [vmem:[%s4 + $0x298] sm:$0xff] %vm3056, %v2965
  %3141 = vst.msk [vmem:[%s4 + $0x2a0] sm:$0xff] %vm3056, %v2966
  %3142 = vst.msk [vmem:[%s4 + $0x2a8] sm:$0xff] %vm3056, %v2967
  %3143 = vst.msk [vmem:[%s4 + $0x2b0] sm:$0xff] %vm3056, %v2968
  %3144 = vst.msk [vmem:[%s4 + $0x2b8] sm:$0xff] %vm3056, %v2969
  %3145 = vst.msk [vmem:[%s4 + $0x2c0] sm:$0xff] %vm3056, %v2970
  %3146 = vst.msk [vmem:[%s4 + $0x2c8] sm:$0xff] %vm3056, %v2971
  %3147 = vst.msk [vmem:[%s4 + $0x2d0] sm:$0xff] %vm3056, %v2972
  %3148 = vst.msk [vmem:[%s4 + $0x2d8] sm:$0xff] %vm3056, %v2973
  %3149 = vst.msk [vmem:[%s4 + $0x2e0] sm:$0xff] %vm3056, %v2974
  %3150 = vst.msk [vmem:[%s4 + $0x2e8] sm:$0xff] %vm3056, %v2975
  %3151 = vst.msk [vmem:[%s4 + $0x2f0] sm:$0xff] %vm3056, %v2976
  %3152 = vst.msk [vmem:[%s4 + $0x2f8] sm:$0xff] %vm3056, %v2977
  %3153 = vst.msk [vmem:[%s4 + $0x300] sm:$0xff] %vm3056, %v2978
  %3154 = vst.msk [vmem:[%s4 + $0x308] sm:$0xff] %vm3056, %v2979
  %3155 = vst.msk [vmem:[%s4 + $0x310] sm:$0xff] %vm3056, %v2980
  %3156 = vst.msk [vmem:[%s4 + $0x318] sm:$0xff] %vm3056, %v2981
  %3157 = vst.msk [vmem:[%s4 + $0x320] sm:$0xff] %vm3056, %v2982
  %3158 = vst.msk [vmem:[%s4 + $0x328] sm:$0xff] %vm3056, %v2983
  %3159 = vst.msk [vmem:[%s4 + $0x330] sm:$0xff] %vm3056, %v2984
  %3160 = vst.msk [vmem:[%s4 + $0x338] sm:$0xff] %vm3056, %v2985
  %3161 = vst.msk [vmem:[%s4 + $0x340] sm:$0xff] %vm3056, %v2986
  %3162 = vst.msk [vmem:[%s4 + $0x348] sm:$0xff] %vm3056, %v2987
  %3163 = vst.msk [vmem:[%s4 + $0x350] sm:$0xff] %vm3056, %v2988
  %3164 = vst.msk [vmem:[%s4 + $0x358] sm:$0xff] %vm3056, %v2989
  %3165 = vst.msk [vmem:[%s4 + $0x360] sm:$0xff] %vm3056, %v2990
  %3166 = vst.msk [vmem:[%s4 + $0x368] sm:$0xff] %vm3056, %v2991
  %3167 = vst.msk [vmem:[%s4 + $0x370] sm:$0xff] %vm3056, %v2992
  %3168 = vst.msk [vmem:[%s4 + $0x378] sm:$0xff] %vm3056, %v2993
  %3169 = vst.msk [vmem:[%s4 + $0x380] sm:$0xff] %vm3056, %v2994
  %3170 = vst.msk [vmem:[%s4 + $0x388] sm:$0xff] %vm3056, %v2995
  %3171 = vst.msk [vmem:[%s4 + $0x390] sm:$0xff] %vm3056, %v2996
  %3172 = vst.msk [vmem:[%s4 + $0x398] sm:$0xff] %vm3056, %v2997
  %3173 = vst.msk [vmem:[%s4 + $0x3a0] sm:$0xff] %vm3056, %v2998
  %3174 = vst.msk [vmem:[%s4 + $0x3a8] sm:$0xff] %vm3056, %v2999
  %3175 = vst.msk [vmem:[%s4 + $0x3b0] sm:$0xff] %vm3056, %v3000
  %3176 = vst.msk [vmem:[%s4 + $0x3b8] sm:$0xff] %vm3056, %v3001
  %3177 = vst.msk [vmem:[%s4 + $0x3c0] sm:$0xff] %vm3056, %v3002
  %3178 = vst.msk [vmem:[%s4 + $0x3c8] sm:$0xff] %vm3056, %v3003
  %3179 = vst.msk [vmem:[%s4 + $0x3d0] sm:$0xff] %vm3056, %v3004
  %3180 = vst.msk [vmem:[%s4 + $0x3d8] sm:$0xff] %vm3056, %v3005
  %3181 = vst.msk [vmem:[%s4 + $0x3e0] sm:$0xff] %vm3056, %v3006
  %3182 = vst.msk [vmem:[%s4 + $0x3e8] sm:$0xff] %vm3056, %v3007
  %3183 = vst.msk [vmem:[%s4 + $0x3f0] sm:$0xff] %vm3056, %v3008
  %3184 = vst.msk [vmem:[%s4 + $0x3f8] sm:$0xff] %vm3056, %v3009
  %3185 = vst.msk [vmem:[%s4 + $0x400] sm:$0xff] %vm3056, %v3010
  %3186 = vst.msk [vmem:[%s4 + $0x408] sm:$0xff] %vm3056, %v3011
  %3187 = vst.msk [vmem:[%s4 + $0x410] sm:$0xff] %vm3056, %v3012
  %3188 = vst.msk [vmem:[%s4 + $0x418] sm:$0xff] %vm3056, %v3013
  %3189 = vst.msk [vmem:[%s4 + $0x420] sm:$0xff] %vm3056, %v3014
  %3190 = vst.msk [vmem:[%s4 + $0x428] sm:$0xff] %vm3056, %v3015
  %3191 = vst.msk [vmem:[%s4 + $0x430] sm:$0xff] %vm3056, %v3016
  %3192 = vst.msk [vmem:[%s4 + $0x438] sm:$0xff] %vm3056, %v3017
  %3193 = vst.msk [vmem:[%s4 + $0x440] sm:$0xff] %vm3056, %v3018
  %3194 = vst.msk [vmem:[%s4 + $0x448] sm:$0xff] %vm3056, %v3019
  %3195 = vst.msk [vmem:[%s4 + $0x450] sm:$0xff] %vm3056, %v3020
  %3196 = vst.msk [vmem:[%s4 + $0x458] sm:$0xff] %vm3056, %v3021
  %3197 = vst.msk [vmem:[%s4 + $0x460] sm:$0xff] %vm3056, %v3022
  %3198 = vst.msk [vmem:[%s4 + $0x468] sm:$0xff] %vm3056, %v3023
  %3199 = vst.msk [vmem:[%s4 + $0x470] sm:$0xff] %vm3056, %v3024
  %3200 = vst.msk [vmem:[%s4 + $0x478] sm:$0xff] %vm3056, %v3025
  %3201 = vst.msk [vmem:[%s4 + $0x480] sm:$0xff] %vm3056, %v3026
  %3202 = vst.msk [vmem:[%s4 + $0x488] sm:$0xff] %vm3056, %v3027
  %3203 = vst.msk [vmem:[%s4 + $0x490] sm:$0xff] %vm3056, %v3028
  %3204 = vst.msk [vmem:[%s4 + $0x498] sm:$0xff] %vm3056, %v3029
  %3205 = vst.msk [vmem:[%s4 + $0x4a0] sm:$0xff] %vm3056, %v3030
  %3206 = vst.msk [vmem:[%s4 + $0x4a8] sm:$0xff] %vm3056, %v3031
  %3207 = vst.msk [vmem:[%s4 + $0x4b0] sm:$0xff] %vm3056, %v3032
  %3208 = vst.msk [vmem:[%s4 + $0x4b8] sm:$0xff] %vm3056, %v3033
  %3209 = vst.msk [vmem:[%s4 + $0x4c0] sm:$0xff] %vm3056, %v3034
  %3210 = vst.msk [vmem:[%s4 + $0x4c8] sm:$0xff] %vm3056, %v3035
  %3211 = vst.msk [vmem:[%s4 + $0x4d0] sm:$0xff] %vm3056, %v3036
  %3212 = vst.msk [vmem:[%s4 + $0x4d8] sm:$0xff] %vm3056, %v3037
  %3213 = vst.msk [vmem:[%s4 + $0x4e0] sm:$0xff] %vm3056, %v3038
  %3214 = vst.msk [vmem:[%s4 + $0x4e8] sm:$0xff] %vm3056, %v3039
  %3215 = vst.msk [vmem:[%s4 + $0x4f0] sm:$0xff] %vm3056, %v3040
  %3216 = vst.msk [vmem:[%s4 + $0x4f8] sm:$0xff] %vm3056, %v3041
  %3217 = vst.msk [vmem:[%s4 + $0x500] sm:$0xff] %vm3056, %v3042
  %3218 = vst.msk [vmem:[%s4 + $0x508] sm:$0xff] %vm3056, %v3043
  %3219 = vst.msk [vmem:[%s4 + $0x510] sm:$0xff] %vm3056, %v3044
  %3220 = vst.msk [vmem:[%s4 + $0x518] sm:$0xff] %vm3056, %v3045
  %3221 = vst.msk [vmem:[%s4 + $0x520] sm:$0xff] %vm3056, %v3046
  %3222 = vst.msk [vmem:[%s4 + $0x528] sm:$0xff] %vm3056, %v3047
  %3223 = vst.msk [vmem:[%s4 + $0x530] sm:$0xff] %vm3056, %v3048
  %3224 = vst.msk [vmem:[%s4 + $0x538] sm:$0xff] %vm3056, %v3049
  %3225 = vst.msk [vmem:[%s4 + $0x540] sm:$0xff] %vm3056, %v3050
  %3226 = vst.msk [vmem:[%s4 + $0x548] sm:$0xff] %vm3056, %v3051
  %3227 = vst.msk [vmem:[%s4 + $0x550] sm:$0xff] %vm3056, %v3052
  %3228 = vst.msk [vmem:[%s4 + $0x558] sm:$0xff] %vm3056, %v3053
  %3229 = vst.msk [vmem:[%s4 + $0x560] sm:$0xff] %vm3056, %v3054
  %3230 = vst.msk [vmem:[%s4 + $0x568] sm:$0xff] %vm3056, %v3055
  // Predicated region
  $region18: #{tpu_custom_call.1} parent=0 // pred_check
    _
  $region19: #{tpu_custom_call.1} parent=0 // pred_check_branch
    %3232 = sbr.rel (0) target = $region21
  $region20: #{tpu_custom_call.1} parent=0 // pred_region
    _
  $region21: #{tpu_custom_call.1} parent=0 // pred_fallthru
    _
  // Predicated region
  $region22: #{tpu_custom_call.1} parent=0 // pred_check
    _
  $region23: #{tpu_custom_call.1} parent=0 // pred_check_branch
    %3234 = sbr.rel (0) target = $region25
  $region24: #{tpu_custom_call.1} parent=0 // pred_region
    _
  $region25: #{tpu_custom_call.1} parent=0 // pred_fallthru
    _

</llo_original>
